<compile_context>
chip_gen: v5e
topology: v5e:2x2
jax: 0.10.0
libtpu: 0.0.40
codegen_flags: <defaults>
</compile_context>

<pallas_src>
import math

import jax
import jax.numpy as jnp
from jax import lax
from jax.experimental import pallas as pl
from jax.experimental.pallas import tpu as pltpu

_LOG2 = math.log(2.0)


def _round_up(n, m):
    return ((n + m - 1) // m) * m


def _ssp(x, trans_dtype=jnp.float32):
    """Shifted softplus ssp(x) = softplus(x) - log(2), numerically stable.

    The transcendentals (exp / log1p -> EUP) run in `trans_dtype` (bf16 on
    v6e/v7x, where the EUP has a ~2x bf16 path); max / bias / residual adds
    stay in f32.
    """
    z = jnp.exp((-jnp.abs(x)).astype(trans_dtype))
    t = jnp.log1p(z).astype(jnp.float32)
    return jnp.maximum(x, 0.0) + t - _LOG2


def _detect_tpu():
    """Best-effort TPU generation sniff (used only for perf knobs)."""
    kind = ""
    try:
        kind = jax.devices()[0].device_kind.lower()
    except Exception:
        pass
    is_v7 = ("v7" in kind) or ("7x" in kind) or ("tpu7" in kind)
    bf16_eup = is_v7 or ("v6" in kind) or ("6e" in kind)   # not on v5e (f32 EUP only)
    num_tc = 2 if is_v7 else 1
    return bf16_eup, num_tc


def make_output_layer_kernel(n_res_output, n_read_out, matmul_dtype, trans_dtype):
    def kernel(*refs):
        it = iter(refs)
        x_ref = next(it)
        if n_res_output > 0:
            rw1_ref = next(it)   # [L, F, F]
            rb1_ref = next(it)   # [L, F, 1]
            rw2_ref = next(it)
            rb2_ref = next(it)
        read_refs = [(next(it), next(it)) for _ in range(n_read_out)]
        lin_w_ref = next(it)
        out_ref = next(it)
        embed_ref = next(it)

        # Rows-on-lanes: transpose the [tile_n, F] input block once on the idle
        # XLU; activations are carried as [feature, rows] slabs so VPU/EUP work
        # is lane-dense and both outputs store as unmasked full-width blocks.
        h = jnp.transpose(x_ref[...].astype(jnp.float32))        # [F, tile_n]

        if n_res_output > 0:
            # Residual layers: h = h + (W2 @ ssp(W1 @ ssp(h) + b1) + b2)
            def res_body(l, h):
                a = _ssp(h, trans_dtype).astype(matmul_dtype)
                y = jnp.dot(rw1_ref[l], a,
                            preferred_element_type=jnp.float32) + rb1_ref[l]
                a = _ssp(y, trans_dtype).astype(matmul_dtype)
                y = jnp.dot(rw2_ref[l], a,
                            preferred_element_type=jnp.float32) + rb2_ref[l]
                return h + y

            h = lax.fori_loop(0, n_res_output, res_body, h, unroll=True)

        # Read-out layers with dim decay: h = W_i @ ssp(h) + b_i
        for w_ref, b_ref in read_refs:
            a = _ssp(h, trans_dtype).astype(matmul_dtype)
            h = jnp.dot(w_ref[...], a,
                        preferred_element_type=jnp.float32) + b_ref[...]

        embed = _ssp(h, trans_dtype)                              # [last_dim, tile_n] f32
        embed_ref[...] = embed.astype(embed_ref.dtype)

        # Final linear (no bias). Zero-initialized in the module but trainable,
        # so the matmul is kept for general (trained) weights.
        out_ref[...] = jnp.dot(lin_w_ref[...], embed.astype(matmul_dtype),
                               preferred_element_type=jnp.float32).astype(out_ref.dtype)

    return kernel


def _flatten_params(params, matmul_dtype):
    """Flatten params to the ref order expected by the kernel.

    Residual-layer weights are stacked along a leading layer axis; weights
    (PyTorch layout (out, in)) are cast to the matmul dtype, biases become
    (out, 1) f32 columns (broadcast over lanes).
    """
    flat = []
    res = params["res"]
    if res:
        L = len(res)
        flat.append(jnp.stack([w1 for w1, _, _, _ in res]).astype(matmul_dtype))
        flat.append(jnp.stack([b1 for _, b1, _, _ in res]).reshape(L, -1, 1)
                    .astype(jnp.float32))
        flat.append(jnp.stack([w2 for _, _, w2, _ in res]).astype(matmul_dtype))
        flat.append(jnp.stack([b2 for _, _, _, b2 in res]).reshape(L, -1, 1)
                    .astype(jnp.float32))
    for w, b in params["read"]:
        flat += [w.astype(matmul_dtype), b.reshape(-1, 1).astype(jnp.float32)]
    flat.append(params["lin_w"].astype(matmul_dtype))
    return flat


def _resident_spec(shape):
    """Full-array block, constant index_map, single-buffered (fetched once)."""
    zero = (0,) * len(shape)
    return pl.BlockSpec(shape, lambda i, _z=zero: _z, pipeline_mode=pl.Buffered(1))


def _cost_estimate(N, F, n_output, n_res_output, n_read_out, flat_params):
    """Advisory CostEstimate + final (post dim-decay) feature dim."""
    flops = n_res_output * 2 * (2 * F * F) * N
    ssp_elems = 2 * F * n_res_output
    d = F
    for _ in range(n_read_out):
        nd = math.ceil(d / 2)
        flops += 2 * d * nd * N
        ssp_elems += d
        d = nd
    ssp_elems += d
    flops += 2 * d * n_output * N
    transcendentals = 2 * ssp_elems * N
    bytes_accessed = (N * F * 4 + N * n_output * 4 + N * d * 4
                      + sum(int(p.size) * p.dtype.itemsize for p in flat_params))
    ce = pl.CostEstimate(flops=int(flops), transcendentals=int(transcendentals),
                         bytes_accessed=int(bytes_accessed))
    return ce, d


def output_layer_pallas(x, params, *, n_res_output, n_read_out, n_output,
                        tile_n=None, matmul_dtype=jnp.bfloat16,
                        trans_dtype=None, num_tc=None):
    """Fused OutputLayer forward.  x: [N, F].  Returns (out, regularization, embed)."""
    N, F = x.shape

    if trans_dtype is None or num_tc is None:
        bf16_eup, det_tc = _detect_tpu()
        if trans_dtype is None:
            trans_dtype = jnp.bfloat16 if bf16_eup else jnp.float32
        if num_tc is None:
            num_tc = det_tc

    # Tile selection: single grid step on single-TC chips (v5e/v6e), one step
    # per TensorCore on v7x; always lane-aligned, capped at 512 rows per step.
    if tile_n is None:
        per_core = -(-N // num_tc)
        tile_n = min(_round_up(per_core, 128), 512)
    else:
        tile_n = _round_up(tile_n, 128)
    N_pad = _round_up(N, tile_n)

    flat_params = _flatten_params(params, matmul_dtype)
    cost, last_dim = _cost_estimate(N_pad, F, n_output, n_res_output, n_read_out,
                                    flat_params)

    x_in = x if N_pad == N else jnp.pad(x, ((0, N_pad - N), (0, 0)))

    in_specs = [pl.BlockSpec((tile_n, F), lambda i: (i, 0))]
    in_specs += [_resident_spec(p.shape) for p in flat_params]

    out_specs = [
        pl.BlockSpec((n_output, tile_n), lambda i: (0, i)),
        pl.BlockSpec((last_dim, tile_n), lambda i: (0, i)),
    ]
    out_shape = [
        jax.ShapeDtypeStruct((n_output, N_pad), x.dtype),
        jax.ShapeDtypeStruct((last_dim, N_pad), jnp.float32),  # embed kept in f32
    ]

    # VMEM budget from actual buffer sizes: weights single-buffered, streamed
    # tiles double-buffered, plus headroom for in-kernel temporaries.
    weight_bytes = sum(int(p.size) * p.dtype.itemsize for p in flat_params)
    stream_bytes = 2 * tile_n * (F * x.dtype.itemsize
                                 + n_output * x.dtype.itemsize
                                 + last_dim * 4)
    temp_bytes = 8 * tile_n * F * 4
    vmem_limit = int(min(max(2 * (weight_bytes + stream_bytes + temp_bytes),
                             16 << 20), 64 << 20))

    kernel = make_output_layer_kernel(n_res_output, n_read_out, matmul_dtype,
                                      trans_dtype)
    out_t, embed_t = pl.pallas_call(
        kernel,
        out_shape=out_shape,
        grid_spec=pltpu.PrefetchScalarGridSpec(
            num_scalar_prefetch=0,
            grid=(N_pad // tile_n,),
            in_specs=in_specs,
            out_specs=out_specs,
        ),
        compiler_params=pltpu.CompilerParams(
            dimension_semantics=("parallel",),   # shard row tiles across TCs (v7x)
            vmem_limit_bytes=vmem_limit,
        ),
        cost_estimate=cost,
    )(x_in, *flat_params)

    regularization = 0.0  # no ConcreteDropout in this configuration
    # Back to the module's [rows, features] convention (tiny host transposes),
    # dropping any row padding.
    return out_t.T[:N], regularization, embed_t.T[:N]


def init_params(key, F, n_output, n_res_output, n_read_out, zero_last_linear=True):
    """Deterministic synthetic parameters in PyTorch Linear layout: W (out, in), b (out,)."""
    n_lin = 2 * n_res_output + n_read_out + 1
    keys = jax.random.split(key, n_lin)
    ki = 0

    def linear(d_in, d_out):
        nonlocal ki
        kw, kb = jax.random.split(keys[ki]); ki += 1
        s = 1.0 / math.sqrt(d_in)
        w = jax.random.uniform(kw, (d_out, d_in), jnp.float32, -s, s)
        b = jax.random.uniform(kb, (d_out,), jnp.float32, -s, s)
        return w, b

    res = []
    for _ in range(n_res_output):
        w1, b1 = linear(F, F)
        w2, b2 = linear(F, F)
        res.append((w1, b1, w2, b2))

    read = []
    last = F
    for _ in range(n_read_out):
        nxt = math.ceil(last / 2)
        read.append(linear(last, nxt))
        last = nxt

    if zero_last_linear:
        lin_w = jnp.zeros((n_output, last), jnp.float32)
    else:
        s = 1.0 / math.sqrt(last)
        lin_w = jax.random.uniform(keys[ki], (n_output, last), jnp.float32, -s, s)
        ki += 1

    return {"res": res, "read": read, "lin_w": lin_w}, last


def ref_forward(x, params, matmul_dtype=jnp.bfloat16, trans_dtype=jnp.float32):
    """Pure-JAX reference (same weight cast; selectable ssp transcendental dtype)."""
    def lin(a, w, b):
        y = jnp.dot(a.astype(matmul_dtype), w.astype(matmul_dtype).T,
                    preferred_element_type=jnp.float32)
        return y if b is None else y + b.astype(jnp.float32)

    ssp = lambda v: _ssp(v, trans_dtype)
    h = x.astype(jnp.float32)
    for w1, b1, w2, b2 in params["res"]:
        y = lin(ssp(h), w1, b1)
        y = lin(ssp(y), w2, b2)
        h = h + y
    for w, b in params["read"]:
        h = lin(ssp(h), w, b)
    embed = ssp(h)
    out = lin(embed, params["lin_w"], None)
    return out, 0.0, embed


if __name__ == "__main__":
    F = 32            # feature dim
    n_output = 3      # e.g. energy + 2 extra targets
    n_res_output = 2  # residual layers
    n_read_out = 2    # read-out layers with dim decay: 32 -> 16 -> 8
    N = 512           # rows (atoms)

    key = jax.random.PRNGKey(0)
    kx, kp = jax.random.split(key)
    x = jax.random.normal(kx, (N, F), dtype=jnp.float32)

    # zero_last_linear=False so the `out` correctness check is non-vacuous
    # (the module only zeroes the final weight at *init*).
    params, last_dim = init_params(kp, F, n_output, n_res_output, n_read_out,
                                   zero_last_linear=False)

    bf16_eup, num_tc = _detect_tpu()
    trans_dtype = jnp.bfloat16 if bf16_eup else jnp.float32

    out, reg, embed = output_layer_pallas(
        x, params,
        n_res_output=n_res_output, n_read_out=n_read_out, n_output=n_output,
        matmul_dtype=jnp.bfloat16, trans_dtype=trans_dtype, num_tc=num_tc,
    )
    jax.block_until_ready((out, embed))

    assert out.shape == (N, n_output) and embed.shape == (N, last_dim)
    assert reg == 0.0

    # 1) Kernel vs pure-JAX reference with identical dtype choices (tight).
    out_ref, _, embed_ref = ref_forward(x, params, matmul_dtype=jnp.bfloat16,
                                        trans_dtype=trans_dtype)
    assert jnp.allclose(out, out_ref, atol=2e-3, rtol=2e-3), "out mismatch"
    assert jnp.allclose(embed, embed_ref, atol=2e-3, rtol=2e-3), "embed mismatch"

    # 2) Module-fidelity sanity check vs f32 activations (loose: the bf16 EUP
    #    path on v6e/v7x intentionally runs exp/log1p in bf16).
    out_f32, _, embed_f32 = ref_forward(x, params, matmul_dtype=jnp.bfloat16,
                                        trans_dtype=jnp.float32)
    assert jnp.allclose(out, out_f32, atol=5e-2, rtol=5e-2), "out fidelity"
    assert jnp.allclose(embed, embed_f32, atol=5e-2, rtol=5e-2), "embed fidelity"

    print("KERNEL_OK")
</pallas_src>

<mosaic_0001>
module attributes {stable_mosaic.version = 11 : i64} {
  func.func @kernel(%arg0: i32, %arg1: memref<512x32xf32, #tpu.memory_space<vmem>>, %arg2: memref<2x32x32xbf16, #tpu.memory_space<vmem>>, %arg3: memref<2x32x1xf32, #tpu.memory_space<vmem>>, %arg4: memref<2x32x32xbf16, #tpu.memory_space<vmem>>, %arg5: memref<2x32x1xf32, #tpu.memory_space<vmem>>, %arg6: memref<16x32xbf16, #tpu.memory_space<vmem>>, %arg7: memref<16x1xf32, #tpu.memory_space<vmem>>, %arg8: memref<8x16xbf16, #tpu.memory_space<vmem>>, %arg9: memref<8x1xf32, #tpu.memory_space<vmem>>, %arg10: memref<3x8xbf16, #tpu.memory_space<vmem>>, %arg11: memref<3x512xf32, #tpu.memory_space<vmem>>, %arg12: memref<8x512xf32, #tpu.memory_space<vmem>>) attributes {dimension_semantics = [#tpu.dimension_semantics<parallel>], iteration_bounds = array<i64: 1>, scalar_prefetch = 0 : i64, scratch_operands = 0 : i64, tpu.core_type = #tpu.core_type<tc>, window_params = [{transform_indices = @transform_0, window_bounds = array<i64: 512, 32>}, {pipeline_mode = #tpu.pipeline_mode<synchronous>, transform_indices = @transform_1, window_bounds = array<i64: 2, 32, 32>}, {pipeline_mode = #tpu.pipeline_mode<synchronous>, transform_indices = @transform_2, window_bounds = array<i64: 2, 32, 1>}, {pipeline_mode = #tpu.pipeline_mode<synchronous>, transform_indices = @transform_3, window_bounds = array<i64: 2, 32, 32>}, {pipeline_mode = #tpu.pipeline_mode<synchronous>, transform_indices = @transform_4, window_bounds = array<i64: 2, 32, 1>}, {pipeline_mode = #tpu.pipeline_mode<synchronous>, transform_indices = @transform_5, window_bounds = array<i64: 16, 32>}, {pipeline_mode = #tpu.pipeline_mode<synchronous>, transform_indices = @transform_6, window_bounds = array<i64: 16, 1>}, {pipeline_mode = #tpu.pipeline_mode<synchronous>, transform_indices = @transform_7, window_bounds = array<i64: 8, 16>}, {pipeline_mode = #tpu.pipeline_mode<synchronous>, transform_indices = @transform_8, window_bounds = array<i64: 8, 1>}, {pipeline_mode = #tpu.pipeline_mode<synchronous>, transform_indices = @transform_9, window_bounds = array<i64: 3, 8>}, {transform_indices = @transform_10, window_bounds = array<i64: 3, 512>}, {transform_indices = @transform_11, window_bounds = array<i64: 8, 512>}]} {
    %c0 = arith.constant 0 : index
    %c0_0 = arith.constant 0 : index
    %0 = vector.load %arg1[%c0, %c0_0] : memref<512x32xf32, #tpu.memory_space<vmem>>, vector<512x32xf32>
    %1 = tpu.transpose %0, [1, 0] : vector<512x32xf32> -> vector<32x512xf32>
    %c0_i32 = arith.constant 0 : i32
    %2 = math.absf %1 : vector<32x512xf32>
    %cst = arith.constant 0.000000e+00 : f32
    %3 = vector.broadcast %cst : f32 to vector<32x512xf32>
    %4 = arith.subf %3, %2 : vector<32x512xf32>
    %5 = math.exp %4 : vector<32x512xf32>
    %6 = math.log1p %5 : vector<32x512xf32>
    %cst_1 = arith.constant 0.000000e+00 : f32
    %7 = vector.broadcast %cst_1 : f32 to vector<32x512xf32>
    %8 = arith.maximumf %1, %7 : vector<32x512xf32>
    %9 = arith.addf %8, %6 : vector<32x512xf32>
    %cst_2 = arith.constant 0.693147182 : f32
    %10 = vector.broadcast %cst_2 : f32 to vector<32x512xf32>
    %11 = arith.subf %9, %10 : vector<32x512xf32>
    %12 = arith.truncf %11 : vector<32x512xf32> to vector<32x512xbf16>
    %13 = arith.index_cast %c0_i32 : i32 to index
    %c0_3 = arith.constant 0 : index
    %c0_4 = arith.constant 0 : index
    %14 = vector.load %arg2[%13, %c0_3, %c0_4] : memref<2x32x32xbf16, #tpu.memory_space<vmem>>, vector<1x32x32xbf16>
    %15 = vector.shape_cast %14 : vector<1x32x32xbf16> to vector<32x32xbf16>
    %cst_5 = arith.constant dense<0.000000e+00> : vector<32x512xf32>
    %16 = tpu.matmul %15, %12, %cst_5 {dimension_numbers = #tpu.dot_dimension_numbers<[1], [0], [0], [1], [0, 0, 1, 1], [], []>} : vector<32x32xbf16>, vector<32x512xbf16>, vector<32x512xf32> -> vector<32x512xf32>
    %17 = arith.index_cast %c0_i32 : i32 to index
    %c0_6 = arith.constant 0 : index
    %c0_7 = arith.constant 0 : index
    %18 = vector.load %arg3[%17, %c0_6, %c0_7] : memref<2x32x1xf32, #tpu.memory_space<vmem>>, vector<1x32x1xf32>
    %19 = vector.shape_cast %18 : vector<1x32x1xf32> to vector<32x1xf32>
    %20 = vector.broadcast %19 : vector<32x1xf32> to vector<32x512xf32>
    %21 = arith.addf %16, %20 : vector<32x512xf32>
    %22 = math.absf %21 : vector<32x512xf32>
    %cst_8 = arith.constant 0.000000e+00 : f32
    %23 = vector.broadcast %cst_8 : f32 to vector<32x512xf32>
    %24 = arith.subf %23, %22 : vector<32x512xf32>
    %25 = math.exp %24 : vector<32x512xf32>
    %26 = math.log1p %25 : vector<32x512xf32>
    %cst_9 = arith.constant 0.000000e+00 : f32
    %27 = vector.broadcast %cst_9 : f32 to vector<32x512xf32>
    %28 = arith.maximumf %21, %27 : vector<32x512xf32>
    %29 = arith.addf %28, %26 : vector<32x512xf32>
    %cst_10 = arith.constant 0.693147182 : f32
    %30 = vector.broadcast %cst_10 : f32 to vector<32x512xf32>
    %31 = arith.subf %29, %30 : vector<32x512xf32>
    %32 = arith.truncf %31 : vector<32x512xf32> to vector<32x512xbf16>
    %33 = arith.index_cast %c0_i32 : i32 to index
    %c0_11 = arith.constant 0 : index
    %c0_12 = arith.constant 0 : index
    %34 = vector.load %arg4[%33, %c0_11, %c0_12] : memref<2x32x32xbf16, #tpu.memory_space<vmem>>, vector<1x32x32xbf16>
    %35 = vector.shape_cast %34 : vector<1x32x32xbf16> to vector<32x32xbf16>
    %cst_13 = arith.constant dense<0.000000e+00> : vector<32x512xf32>
    %36 = tpu.matmul %35, %32, %cst_13 {dimension_numbers = #tpu.dot_dimension_numbers<[1], [0], [0], [1], [0, 0, 1, 1], [], []>} : vector<32x32xbf16>, vector<32x512xbf16>, vector<32x512xf32> -> vector<32x512xf32>
    %37 = arith.index_cast %c0_i32 : i32 to index
    %c0_14 = arith.constant 0 : index
    %c0_15 = arith.constant 0 : index
    %38 = vector.load %arg5[%37, %c0_14, %c0_15] : memref<2x32x1xf32, #tpu.memory_space<vmem>>, vector<1x32x1xf32>
    %39 = vector.shape_cast %38 : vector<1x32x1xf32> to vector<32x1xf32>
    %40 = vector.broadcast %39 : vector<32x1xf32> to vector<32x512xf32>
    %41 = arith.addf %36, %40 : vector<32x512xf32>
    %42 = arith.addf %1, %41 : vector<32x512xf32>
    %c1_i32 = arith.constant 1 : i32
    %43 = math.absf %42 : vector<32x512xf32>
    %cst_16 = arith.constant 0.000000e+00 : f32
    %44 = vector.broadcast %cst_16 : f32 to vector<32x512xf32>
    %45 = arith.subf %44, %43 : vector<32x512xf32>
    %46 = math.exp %45 : vector<32x512xf32>
    %47 = math.log1p %46 : vector<32x512xf32>
    %cst_17 = arith.constant 0.000000e+00 : f32
    %48 = vector.broadcast %cst_17 : f32 to vector<32x512xf32>
    %49 = arith.maximumf %42, %48 : vector<32x512xf32>
    %50 = arith.addf %49, %47 : vector<32x512xf32>
    %cst_18 = arith.constant 0.693147182 : f32
    %51 = vector.broadcast %cst_18 : f32 to vector<32x512xf32>
    %52 = arith.subf %50, %51 : vector<32x512xf32>
    %53 = arith.truncf %52 : vector<32x512xf32> to vector<32x512xbf16>
    %54 = arith.index_cast %c1_i32 : i32 to index
    %c0_19 = arith.constant 0 : index
    %c0_20 = arith.constant 0 : index
    %55 = vector.load %arg2[%54, %c0_19, %c0_20] : memref<2x32x32xbf16, #tpu.memory_space<vmem>>, vector<1x32x32xbf16>
    %56 = vector.shape_cast %55 : vector<1x32x32xbf16> to vector<32x32xbf16>
    %cst_21 = arith.constant dense<0.000000e+00> : vector<32x512xf32>
    %57 = tpu.matmul %56, %53, %cst_21 {dimension_numbers = #tpu.dot_dimension_numbers<[1], [0], [0], [1], [0, 0, 1, 1], [], []>} : vector<32x32xbf16>, vector<32x512xbf16>, vector<32x512xf32> -> vector<32x512xf32>
    %58 = arith.index_cast %c1_i32 : i32 to index
    %c0_22 = arith.constant 0 : index
    %c0_23 = arith.constant 0 : index
    %59 = vector.load %arg3[%58, %c0_22, %c0_23] : memref<2x32x1xf32, #tpu.memory_space<vmem>>, vector<1x32x1xf32>
    %60 = vector.shape_cast %59 : vector<1x32x1xf32> to vector<32x1xf32>
    %61 = vector.broadcast %60 : vector<32x1xf32> to vector<32x512xf32>
    %62 = arith.addf %57, %61 : vector<32x512xf32>
    %63 = math.absf %62 : vector<32x512xf32>
    %cst_24 = arith.constant 0.000000e+00 : f32
    %64 = vector.broadcast %cst_24 : f32 to vector<32x512xf32>
    %65 = arith.subf %64, %63 : vector<32x512xf32>
    %66 = math.exp %65 : vector<32x512xf32>
    %67 = math.log1p %66 : vector<32x512xf32>
    %cst_25 = arith.constant 0.000000e+00 : f32
    %68 = vector.broadcast %cst_25 : f32 to vector<32x512xf32>
    %69 = arith.maximumf %62, %68 : vector<32x512xf32>
    %70 = arith.addf %69, %67 : vector<32x512xf32>
    %cst_26 = arith.constant 0.693147182 : f32
    %71 = vector.broadcast %cst_26 : f32 to vector<32x512xf32>
    %72 = arith.subf %70, %71 : vector<32x512xf32>
    %73 = arith.truncf %72 : vector<32x512xf32> to vector<32x512xbf16>
    %74 = arith.index_cast %c1_i32 : i32 to index
    %c0_27 = arith.constant 0 : index
    %c0_28 = arith.constant 0 : index
    %75 = vector.load %arg4[%74, %c0_27, %c0_28] : memref<2x32x32xbf16, #tpu.memory_space<vmem>>, vector<1x32x32xbf16>
    %76 = vector.shape_cast %75 : vector<1x32x32xbf16> to vector<32x32xbf16>
    %cst_29 = arith.constant dense<0.000000e+00> : vector<32x512xf32>
    %77 = tpu.matmul %76, %73, %cst_29 {dimension_numbers = #tpu.dot_dimension_numbers<[1], [0], [0], [1], [0, 0, 1, 1], [], []>} : vector<32x32xbf16>, vector<32x512xbf16>, vector<32x512xf32> -> vector<32x512xf32>
    %78 = arith.index_cast %c1_i32 : i32 to index
    %c0_30 = arith.constant 0 : index
    %c0_31 = arith.constant 0 : index
    %79 = vector.load %arg5[%78, %c0_30, %c0_31] : memref<2x32x1xf32, #tpu.memory_space<vmem>>, vector<1x32x1xf32>
    %80 = vector.shape_cast %79 : vector<1x32x1xf32> to vector<32x1xf32>
    %81 = vector.broadcast %80 : vector<32x1xf32> to vector<32x512xf32>
    %82 = arith.addf %77, %81 : vector<32x512xf32>
    %83 = arith.addf %42, %82 : vector<32x512xf32>
    %c2_i32 = arith.constant 2 : i32
    %84 = math.absf %83 : vector<32x512xf32>
    %cst_32 = arith.constant 0.000000e+00 : f32
    %85 = vector.broadcast %cst_32 : f32 to vector<32x512xf32>
    %86 = arith.subf %85, %84 : vector<32x512xf32>
    %87 = math.exp %86 : vector<32x512xf32>
    %88 = math.log1p %87 : vector<32x512xf32>
    %cst_33 = arith.constant 0.000000e+00 : f32
    %89 = vector.broadcast %cst_33 : f32 to vector<32x512xf32>
    %90 = arith.maximumf %83, %89 : vector<32x512xf32>
    %91 = arith.addf %90, %88 : vector<32x512xf32>
    %cst_34 = arith.constant 0.693147182 : f32
    %92 = vector.broadcast %cst_34 : f32 to vector<32x512xf32>
    %93 = arith.subf %91, %92 : vector<32x512xf32>
    %94 = arith.truncf %93 : vector<32x512xf32> to vector<32x512xbf16>
    %c0_35 = arith.constant 0 : index
    %c0_36 = arith.constant 0 : index
    %95 = vector.load %arg6[%c0_35, %c0_36] : memref<16x32xbf16, #tpu.memory_space<vmem>>, vector<16x32xbf16>
    %cst_37 = arith.constant dense<0.000000e+00> : vector<16x512xf32>
    %96 = tpu.matmul %95, %94, %cst_37 {dimension_numbers = #tpu.dot_dimension_numbers<[1], [0], [0], [1], [0, 0, 1, 1], [], []>} : vector<16x32xbf16>, vector<32x512xbf16>, vector<16x512xf32> -> vector<16x512xf32>
    %c0_38 = arith.constant 0 : index
    %c0_39 = arith.constant 0 : index
    %97 = vector.load %arg7[%c0_38, %c0_39] : memref<16x1xf32, #tpu.memory_space<vmem>>, vector<16x1xf32>
    %98 = vector.broadcast %97 : vector<16x1xf32> to vector<16x512xf32>
    %99 = arith.addf %96, %98 : vector<16x512xf32>
    %100 = math.absf %99 : vector<16x512xf32>
    %cst_40 = arith.constant 0.000000e+00 : f32
    %101 = vector.broadcast %cst_40 : f32 to vector<16x512xf32>
    %102 = arith.subf %101, %100 : vector<16x512xf32>
    %103 = math.exp %102 : vector<16x512xf32>
    %104 = math.log1p %103 : vector<16x512xf32>
    %cst_41 = arith.constant 0.000000e+00 : f32
    %105 = vector.broadcast %cst_41 : f32 to vector<16x512xf32>
    %106 = arith.maximumf %99, %105 : vector<16x512xf32>
    %107 = arith.addf %106, %104 : vector<16x512xf32>
    %cst_42 = arith.constant 0.693147182 : f32
    %108 = vector.broadcast %cst_42 : f32 to vector<16x512xf32>
    %109 = arith.subf %107, %108 : vector<16x512xf32>
    %110 = arith.truncf %109 : vector<16x512xf32> to vector<16x512xbf16>
    %c0_43 = arith.constant 0 : index
    %c0_44 = arith.constant 0 : index
    %111 = vector.load %arg8[%c0_43, %c0_44] : memref<8x16xbf16, #tpu.memory_space<vmem>>, vector<8x16xbf16>
    %cst_45 = arith.constant dense<0.000000e+00> : vector<8x512xf32>
    %112 = tpu.matmul %111, %110, %cst_45 {dimension_numbers = #tpu.dot_dimension_numbers<[1], [0], [0], [1], [0, 0, 1, 1], [], []>} : vector<8x16xbf16>, vector<16x512xbf16>, vector<8x512xf32> -> vector<8x512xf32>
    %c0_46 = arith.constant 0 : index
    %c0_47 = arith.constant 0 : index
    %113 = vector.load %arg9[%c0_46, %c0_47] : memref<8x1xf32, #tpu.memory_space<vmem>>, vector<8x1xf32>
    %114 = vector.broadcast %113 : vector<8x1xf32> to vector<8x512xf32>
    %115 = arith.addf %112, %114 : vector<8x512xf32>
    %116 = math.absf %115 : vector<8x512xf32>
    %cst_48 = arith.constant 0.000000e+00 : f32
    %117 = vector.broadcast %cst_48 : f32 to vector<8x512xf32>
    %118 = arith.subf %117, %116 : vector<8x512xf32>
    %119 = math.exp %118 : vector<8x512xf32>
    %120 = math.log1p %119 : vector<8x512xf32>
    %cst_49 = arith.constant 0.000000e+00 : f32
    %121 = vector.broadcast %cst_49 : f32 to vector<8x512xf32>
    %122 = arith.maximumf %115, %121 : vector<8x512xf32>
    %123 = arith.addf %122, %120 : vector<8x512xf32>
    %cst_50 = arith.constant 0.693147182 : f32
    %124 = vector.broadcast %cst_50 : f32 to vector<8x512xf32>
    %125 = arith.subf %123, %124 : vector<8x512xf32>
    %c0_51 = arith.constant 0 : index
    %c0_52 = arith.constant 0 : index
    %126 = vector.load %arg12[%c0_51, %c0_52] : memref<8x512xf32, #tpu.memory_space<vmem>>, vector<8x512xf32>
    tpu.vector_store %arg12[%c0_51, %c0_52], %125 {strides = array<i32>} : memref<8x512xf32, #tpu.memory_space<vmem>>, vector<8x512xf32>,
    %c0_53 = arith.constant 0 : index
    %c0_54 = arith.constant 0 : index
    %127 = vector.load %arg10[%c0_53, %c0_54] : memref<3x8xbf16, #tpu.memory_space<vmem>>, vector<3x8xbf16>
    %128 = arith.truncf %125 : vector<8x512xf32> to vector<8x512xbf16>
    %cst_55 = arith.constant dense<0.000000e+00> : vector<3x512xf32>
    %129 = tpu.matmul %127, %128, %cst_55 {dimension_numbers = #tpu.dot_dimension_numbers<[1], [0], [0], [1], [0, 0, 1, 1], [], []>} : vector<3x8xbf16>, vector<8x512xbf16>, vector<3x512xf32> -> vector<3x512xf32>
    %c0_56 = arith.constant 0 : index
    %c0_57 = arith.constant 0 : index
    %130 = vector.load %arg11[%c0_56, %c0_57] : memref<3x512xf32, #tpu.memory_space<vmem>>, vector<3x512xf32>
    tpu.vector_store %arg11[%c0_56, %c0_57], %129 {strides = array<i32>} : memref<3x512xf32, #tpu.memory_space<vmem>>, vector<3x512xf32>,
    return
  }
  func.func @transform_0(%arg0: i32) -> (i32, i32) {
    %c0_i32 = arith.constant 0 : i32
    %c0_i32_0 = arith.constant 0 : i32
    return %arg0, %c0_i32 : i32, i32
  }
  func.func @transform_1(%arg0: i32) -> (i32, i32, i32) {
    %c0_i32 = arith.constant 0 : i32
    %c0_i32_0 = arith.constant 0 : i32
    %c0_i32_1 = arith.constant 0 : i32
    %c0_i32_2 = arith.constant 0 : i32
    return %c0_i32, %c0_i32_0, %c0_i32_1 : i32, i32, i32
  }
  func.func @transform_2(%arg0: i32) -> (i32, i32, i32) {
    %c0_i32 = arith.constant 0 : i32
    %c0_i32_0 = arith.constant 0 : i32
    %c0_i32_1 = arith.constant 0 : i32
    %c0_i32_2 = arith.constant 0 : i32
    return %c0_i32, %c0_i32_0, %c0_i32_1 : i32, i32, i32
  }
  func.func @transform_3(%arg0: i32) -> (i32, i32, i32) {
    %c0_i32 = arith.constant 0 : i32
    %c0_i32_0 = arith.constant 0 : i32
    %c0_i32_1 = arith.constant 0 : i32
    %c0_i32_2 = arith.constant 0 : i32
    return %c0_i32, %c0_i32_0, %c0_i32_1 : i32, i32, i32
  }
  func.func @transform_4(%arg0: i32) -> (i32, i32, i32) {
    %c0_i32 = arith.constant 0 : i32
    %c0_i32_0 = arith.constant 0 : i32
    %c0_i32_1 = arith.constant 0 : i32
    %c0_i32_2 = arith.constant 0 : i32
    return %c0_i32, %c0_i32_0, %c0_i32_1 : i32, i32, i32
  }
  func.func @transform_5(%arg0: i32) -> (i32, i32) {
    %c0_i32 = arith.constant 0 : i32
    %c0_i32_0 = arith.constant 0 : i32
    %c0_i32_1 = arith.constant 0 : i32
    return %c0_i32, %c0_i32_0 : i32, i32
  }
  func.func @transform_6(%arg0: i32) -> (i32, i32) {
    %c0_i32 = arith.constant 0 : i32
    %c0_i32_0 = arith.constant 0 : i32
    %c0_i32_1 = arith.constant 0 : i32
    return %c0_i32, %c0_i32_0 : i32, i32
  }
  func.func @transform_7(%arg0: i32) -> (i32, i32) {
    %c0_i32 = arith.constant 0 : i32
    %c0_i32_0 = arith.constant 0 : i32
    %c0_i32_1 = arith.constant 0 : i32
    return %c0_i32, %c0_i32_0 : i32, i32
  }
  func.func @transform_8(%arg0: i32) -> (i32, i32) {
    %c0_i32 = arith.constant 0 : i32
    %c0_i32_0 = arith.constant 0 : i32
    %c0_i32_1 = arith.constant 0 : i32
    return %c0_i32, %c0_i32_0 : i32, i32
  }
  func.func @transform_9(%arg0: i32) -> (i32, i32) {
    %c0_i32 = arith.constant 0 : i32
    %c0_i32_0 = arith.constant 0 : i32
    %c0_i32_1 = arith.constant 0 : i32
    return %c0_i32, %c0_i32_0 : i32, i32
  }
  func.func @transform_10(%arg0: i32) -> (i32, i32) {
    %c0_i32 = arith.constant 0 : i32
    %c0_i32_0 = arith.constant 0 : i32
    return %c0_i32, %arg0 : i32, i32
  }
  func.func @transform_11(%arg0: i32) -> (i32, i32) {
    %c0_i32 = arith.constant 0 : i32
    %c0_i32_0 = arith.constant 0 : i32
    return %c0_i32, %arg0 : i32, i32
  }
}

</mosaic_0001>

<llo_original>
// kernel: tpu_custom_call.1
$region0: #{tpu_custom_call.1}
  #allocation0 [shape = 'u32[]', space=smem, size = 0x4, offset = 0x4, fixed_abs, tag = 'smem constant byte address 0x4 - core index']
  #allocation1 [shape = 'u32[72,128]{1,0:T(1,128)}', space=vmem, size = 0x9000, scoped, tag = 'internal scratch']
  %s0 = inlined_call_operand.vmem [shape: f32[512,32], index: 0, kind: input, shape index: {}]
  %s1 = inlined_call_operand.vmem [shape: bf16[2,32,32], index: 1, kind: input, shape index: {}]
  %s2 = inlined_call_operand.vmem [shape: f32[2,32,1], index: 2, kind: input, shape index: {}]
  %s3 = inlined_call_operand.vmem [shape: bf16[2,32,32], index: 3, kind: input, shape index: {}]
  %s4 = inlined_call_operand.vmem [shape: f32[2,32,1], index: 4, kind: input, shape index: {}]
  %s5 = inlined_call_operand.vmem [shape: bf16[16,32], index: 5, kind: input, shape index: {}]
  %s6 = inlined_call_operand.vmem [shape: f32[16,1], index: 6, kind: input, shape index: {}]
  %s7 = inlined_call_operand.vmem [shape: bf16[8,16], index: 7, kind: input, shape index: {}]
  %s8 = inlined_call_operand.vmem [shape: f32[8,1], index: 8, kind: input, shape index: {}]
  %s9 = inlined_call_operand.vmem [shape: bf16[3,8], index: 9, kind: input, shape index: {}]
  %s10 = inlined_call_operand.hbm [shape: f32[3,512], index: 10, kind: output, shape index: {0}]
  %s11 = inlined_call_operand.hbm [shape: f32[8,512], index: 11, kind: output, shape index: {1}]
  %12 = xla_tuple %s10, %s11
  %s13 = sld [smem:[#allocation0]]
  $region58: #{tpu_custom_call.1} parent=0
    _
  %s15 = ssub.s32 1, %s13
  %s16 = scalar_select 0, %s15, %s13
  $region1: #{tpu_custom_call.1} parent=0
    #allocation2 [shape = 'u8[8192]{0}', space=vmem, size = 0x2000, scoped, tag = 'output window, operand 0, single buffered']
    #allocation3 [shape = 's32[1]{0}', space=sflag, size = 0x4, scoped, tag = 'scoped memory for tpu_custom_call.1']
    #allocation4 [shape = 'u8[16384]{0}', space=vmem, size = 0x4000, scoped, tag = 'output window, operand 1, single buffered']
    #allocation5 [shape = 's32[1]{0}', space=sflag, size = 0x4, scoped, tag = 'scoped memory for tpu_custom_call.1']
    %17 = vsyncpa [#allocation3], 0
    %18 = vsyncpa [#allocation5], 0
    // Predicated region
    $region2: #{tpu_custom_call.1} parent=1 // pred_check
      _
    $region3: #{tpu_custom_call.1} parent=1 // pred_check_branch
      %20 = sbr.rel (0) target = $region5
    $region4: #{tpu_custom_call.1} parent=1 // pred_region
      _
    $region5: #{tpu_custom_call.1} parent=1 // pred_fallthru
      _
    // Predicated region
    $region6: #{tpu_custom_call.1} parent=1 // pred_check
      _
    $region7: #{tpu_custom_call.1} parent=1 // pred_check_branch
      %22 = sbr.rel (0) target = $region9
    $region8: #{tpu_custom_call.1} parent=1 // pred_region
      _
    $region9: #{tpu_custom_call.1} parent=1 // pred_fallthru
      _
    // Predicated region
    $region10: #{tpu_custom_call.1} parent=1 // pred_check
      _
    $region11: #{tpu_custom_call.1} parent=1 // pred_check_branch
      %24 = sbr.rel (0) target = $region13
    $region12: #{tpu_custom_call.1} parent=1 // pred_region
      _
    $region13: #{tpu_custom_call.1} parent=1 // pred_fallthru
      _
    // Predicated region
    $region14: #{tpu_custom_call.1} parent=1 // pred_check
      _
    $region15: #{tpu_custom_call.1} parent=1 // pred_check_branch
      %26 = sbr.rel (0) target = $region17
    $region16: #{tpu_custom_call.1} parent=1 // pred_region
      _
    $region17: #{tpu_custom_call.1} parent=1 // pred_fallthru
      _
    // Predicated region
    $region18: #{tpu_custom_call.1} parent=1 // pred_check
      _
    $region19: #{tpu_custom_call.1} parent=1 // pred_check_branch
      %28 = sbr.rel (0) target = $region21
    $region20: #{tpu_custom_call.1} parent=1 // pred_region
      _
    $region21: #{tpu_custom_call.1} parent=1 // pred_fallthru
      _
    // Predicated region
    $region22: #{tpu_custom_call.1} parent=1 // pred_check
      _
    $region23: #{tpu_custom_call.1} parent=1 // pred_check_branch
      %30 = sbr.rel (0) target = $region25
    $region24: #{tpu_custom_call.1} parent=1 // pred_region
      _
    $region25: #{tpu_custom_call.1} parent=1 // pred_fallthru
      _
    // Predicated region
    $region26: #{tpu_custom_call.1} parent=1 // pred_check
      _
    $region27: #{tpu_custom_call.1} parent=1 // pred_check_branch
      %32 = sbr.rel (0) target = $region29
    $region28: #{tpu_custom_call.1} parent=1 // pred_region
      _
    $region29: #{tpu_custom_call.1} parent=1 // pred_fallthru
      _
    // Predicated region
    $region30: #{tpu_custom_call.1} parent=1 // pred_check
      _
    $region31: #{tpu_custom_call.1} parent=1 // pred_check_branch
      %34 = sbr.rel (0) target = $region33
    $region32: #{tpu_custom_call.1} parent=1 // pred_region
      _
    $region33: #{tpu_custom_call.1} parent=1 // pred_fallthru
      _
    // Predicated region
    $region34: #{tpu_custom_call.1} parent=1 // pred_check
      _
    $region35: #{tpu_custom_call.1} parent=1 // pred_check_branch
      %36 = sbr.rel (0) target = $region37
    $region36: #{tpu_custom_call.1} parent=1 // pred_region
      _
    $region37: #{tpu_custom_call.1} parent=1 // pred_fallthru
      _
    // Predicated region
    $region38: #{tpu_custom_call.1} parent=1 // pred_check
      _
    $region39: #{tpu_custom_call.1} parent=1 // pred_check_branch
      %38 = sbr.rel (0) target = $region41
    $region40: #{tpu_custom_call.1} parent=1 // pred_region
      _
    $region41: #{tpu_custom_call.1} parent=1 // pred_fallthru
      _
    %v40 = vld [vmem:[%s0] sm:$0xff]
    %v41 = vld [vmem:[%s0 + $0x8] sm:$0xff]
    %v42 = vld [vmem:[%s0 + $0x10] sm:$0xff]
    %v43 = vld [vmem:[%s0 + $0x18] sm:$0xff]
    %v44 = vld [vmem:[%s0 + $0x20] sm:$0xff]
    %v45 = vld [vmem:[%s0 + $0x28] sm:$0xff]
    %v46 = vld [vmem:[%s0 + $0x30] sm:$0xff]
    %v47 = vld [vmem:[%s0 + $0x38] sm:$0xff]
    %v48 = vld [vmem:[%s0 + $0x40] sm:$0xff]
    %v49 = vld [vmem:[%s0 + $0x48] sm:$0xff]
    %v50 = vld [vmem:[%s0 + $0x50] sm:$0xff]
    %v51 = vld [vmem:[%s0 + $0x58] sm:$0xff]
    %v52 = vld [vmem:[%s0 + $0x60] sm:$0xff]
    %v53 = vld [vmem:[%s0 + $0x68] sm:$0xff]
    %v54 = vld [vmem:[%s0 + $0x70] sm:$0xff]
    %v55 = vld [vmem:[%s0 + $0x78] sm:$0xff]
    %v56 = vld [vmem:[%s0 + $0x80] sm:$0xff]
    %v57 = vld [vmem:[%s0 + $0x88] sm:$0xff]
    %v58 = vld [vmem:[%s0 + $0x90] sm:$0xff]
    %v59 = vld [vmem:[%s0 + $0x98] sm:$0xff]
    %v60 = vld [vmem:[%s0 + $0xa0] sm:$0xff]
    %v61 = vld [vmem:[%s0 + $0xa8] sm:$0xff]
    %v62 = vld [vmem:[%s0 + $0xb0] sm:$0xff]
    %v63 = vld [vmem:[%s0 + $0xb8] sm:$0xff]
    %v64 = vld [vmem:[%s0 + $0xc0] sm:$0xff]
    %v65 = vld [vmem:[%s0 + $0xc8] sm:$0xff]
    %v66 = vld [vmem:[%s0 + $0xd0] sm:$0xff]
    %v67 = vld [vmem:[%s0 + $0xd8] sm:$0xff]
    %v68 = vld [vmem:[%s0 + $0xe0] sm:$0xff]
    %v69 = vld [vmem:[%s0 + $0xe8] sm:$0xff]
    %v70 = vld [vmem:[%s0 + $0xf0] sm:$0xff]
    %v71 = vld [vmem:[%s0 + $0xf8] sm:$0xff]
    %v72 = vld [vmem:[%s0 + $0x100] sm:$0xff]
    %v73 = vld [vmem:[%s0 + $0x108] sm:$0xff]
    %v74 = vld [vmem:[%s0 + $0x110] sm:$0xff]
    %v75 = vld [vmem:[%s0 + $0x118] sm:$0xff]
    %v76 = vld [vmem:[%s0 + $0x120] sm:$0xff]
    %v77 = vld [vmem:[%s0 + $0x128] sm:$0xff]
    %v78 = vld [vmem:[%s0 + $0x130] sm:$0xff]
    %v79 = vld [vmem:[%s0 + $0x138] sm:$0xff]
    %v80 = vld [vmem:[%s0 + $0x140] sm:$0xff]
    %v81 = vld [vmem:[%s0 + $0x148] sm:$0xff]
    %v82 = vld [vmem:[%s0 + $0x150] sm:$0xff]
    %v83 = vld [vmem:[%s0 + $0x158] sm:$0xff]
    %v84 = vld [vmem:[%s0 + $0x160] sm:$0xff]
    %v85 = vld [vmem:[%s0 + $0x168] sm:$0xff]
    %v86 = vld [vmem:[%s0 + $0x170] sm:$0xff]
    %v87 = vld [vmem:[%s0 + $0x178] sm:$0xff]
    %v88 = vld [vmem:[%s0 + $0x180] sm:$0xff]
    %v89 = vld [vmem:[%s0 + $0x188] sm:$0xff]
    %v90 = vld [vmem:[%s0 + $0x190] sm:$0xff]
    %v91 = vld [vmem:[%s0 + $0x198] sm:$0xff]
    %v92 = vld [vmem:[%s0 + $0x1a0] sm:$0xff]
    %v93 = vld [vmem:[%s0 + $0x1a8] sm:$0xff]
    %v94 = vld [vmem:[%s0 + $0x1b0] sm:$0xff]
    %v95 = vld [vmem:[%s0 + $0x1b8] sm:$0xff]
    %v96 = vld [vmem:[%s0 + $0x1c0] sm:$0xff]
    %v97 = vld [vmem:[%s0 + $0x1c8] sm:$0xff]
    %v98 = vld [vmem:[%s0 + $0x1d0] sm:$0xff]
    %v99 = vld [vmem:[%s0 + $0x1d8] sm:$0xff]
    %v100 = vld [vmem:[%s0 + $0x1e0] sm:$0xff]
    %v101 = vld [vmem:[%s0 + $0x1e8] sm:$0xff]
    %v102 = vld [vmem:[%s0 + $0x1f0] sm:$0xff]
    %v103 = vld [vmem:[%s0 + $0x1f8] sm:$0xff]
    %104 = vxpose.xlu0.b32.start [1/16] %v40, 128
    %105 = vxpose.xlu0.b32.cont [2/16] %v41, 128
    %106 = vxpose.xlu0.b32.cont [3/16] %v42, 128
    %107 = vxpose.xlu0.b32.cont [4/16] %v43, 128
    %108 = vxpose.xlu0.b32.cont [5/16] %v44, 128
    %109 = vxpose.xlu0.b32.cont [6/16] %v45, 128
    %110 = vxpose.xlu0.b32.cont [7/16] %v46, 128
    %111 = vxpose.xlu0.b32.cont [8/16] %v47, 128
    %112 = vxpose.xlu0.b32.cont [9/16] %v48, 128
    %113 = vxpose.xlu0.b32.cont [10/16] %v49, 128
    %114 = vxpose.xlu0.b32.cont [11/16] %v50, 128
    %115 = vxpose.xlu0.b32.cont [12/16] %v51, 128
    %116 = vxpose.xlu0.b32.cont [13/16] %v52, 128
    %117 = vxpose.xlu0.b32.cont [14/16] %v53, 128
    %118 = vxpose.xlu0.b32.cont [15/16] %v54, 128
    %119 = vxpose.xlu0.b32.end [16/16] %v55, 128
    %v120 = vpop.trf.xlu0
    %v121 = vpop.trf.xlu0
    %v122 = vpop.trf.xlu0
    %v123 = vpop.trf.xlu0
    %v124 = vpop.trf.xlu0
    %v125 = vpop.trf.xlu0
    %v126 = vpop.trf.xlu0
    %v127 = vpop.trf.xlu0
    %v128 = vpop.trf.xlu0
    %v129 = vpop.trf.xlu0
    %v130 = vpop.trf.xlu0
    %v131 = vpop.trf.xlu0
    %v132 = vpop.trf.xlu0
    %v133 = vpop.trf.xlu0
    %v134 = vpop.trf.xlu0
    %v135 = vpop.trf.xlu0
    %136 = vxpose.xlu0.b32.start [1/16] %v56, 128
    %137 = vxpose.xlu0.b32.cont [2/16] %v57, 128
    %138 = vxpose.xlu0.b32.cont [3/16] %v58, 128
    %139 = vxpose.xlu0.b32.cont [4/16] %v59, 128
    %140 = vxpose.xlu0.b32.cont [5/16] %v60, 128
    %141 = vxpose.xlu0.b32.cont [6/16] %v61, 128
    %142 = vxpose.xlu0.b32.cont [7/16] %v62, 128
    %143 = vxpose.xlu0.b32.cont [8/16] %v63, 128
    %144 = vxpose.xlu0.b32.cont [9/16] %v64, 128
    %145 = vxpose.xlu0.b32.cont [10/16] %v65, 128
    %146 = vxpose.xlu0.b32.cont [11/16] %v66, 128
    %147 = vxpose.xlu0.b32.cont [12/16] %v67, 128
    %148 = vxpose.xlu0.b32.cont [13/16] %v68, 128
    %149 = vxpose.xlu0.b32.cont [14/16] %v69, 128
    %150 = vxpose.xlu0.b32.cont [15/16] %v70, 128
    %151 = vxpose.xlu0.b32.end [16/16] %v71, 128
    %v152 = vpop.trf.xlu0
    %v153 = vpop.trf.xlu0
    %v154 = vpop.trf.xlu0
    %v155 = vpop.trf.xlu0
    %v156 = vpop.trf.xlu0
    %v157 = vpop.trf.xlu0
    %v158 = vpop.trf.xlu0
    %v159 = vpop.trf.xlu0
    %v160 = vpop.trf.xlu0
    %v161 = vpop.trf.xlu0
    %v162 = vpop.trf.xlu0
    %v163 = vpop.trf.xlu0
    %v164 = vpop.trf.xlu0
    %v165 = vpop.trf.xlu0
    %v166 = vpop.trf.xlu0
    %v167 = vpop.trf.xlu0
    %168 = vxpose.xlu0.b32.start [1/16] %v72, 128
    %169 = vxpose.xlu0.b32.cont [2/16] %v73, 128
    %170 = vxpose.xlu0.b32.cont [3/16] %v74, 128
    %171 = vxpose.xlu0.b32.cont [4/16] %v75, 128
    %172 = vxpose.xlu0.b32.cont [5/16] %v76, 128
    %173 = vxpose.xlu0.b32.cont [6/16] %v77, 128
    %174 = vxpose.xlu0.b32.cont [7/16] %v78, 128
    %175 = vxpose.xlu0.b32.cont [8/16] %v79, 128
    %176 = vxpose.xlu0.b32.cont [9/16] %v80, 128
    %177 = vxpose.xlu0.b32.cont [10/16] %v81, 128
    %178 = vxpose.xlu0.b32.cont [11/16] %v82, 128
    %179 = vxpose.xlu0.b32.cont [12/16] %v83, 128
    %180 = vxpose.xlu0.b32.cont [13/16] %v84, 128
    %181 = vxpose.xlu0.b32.cont [14/16] %v85, 128
    %182 = vxpose.xlu0.b32.cont [15/16] %v86, 128
    %183 = vxpose.xlu0.b32.end [16/16] %v87, 128
    %v184 = vpop.trf.xlu0
    %v185 = vpop.trf.xlu0
    %v186 = vpop.trf.xlu0
    %v187 = vpop.trf.xlu0
    %v188 = vpop.trf.xlu0
    %v189 = vpop.trf.xlu0
    %v190 = vpop.trf.xlu0
    %v191 = vpop.trf.xlu0
    %v192 = vpop.trf.xlu0
    %v193 = vpop.trf.xlu0
    %v194 = vpop.trf.xlu0
    %v195 = vpop.trf.xlu0
    %v196 = vpop.trf.xlu0
    %v197 = vpop.trf.xlu0
    %v198 = vpop.trf.xlu0
    %v199 = vpop.trf.xlu0
    %200 = vxpose.xlu0.b32.start [1/16] %v88, 128
    %201 = vxpose.xlu0.b32.cont [2/16] %v89, 128
    %202 = vxpose.xlu0.b32.cont [3/16] %v90, 128
    %203 = vxpose.xlu0.b32.cont [4/16] %v91, 128
    %204 = vxpose.xlu0.b32.cont [5/16] %v92, 128
    %205 = vxpose.xlu0.b32.cont [6/16] %v93, 128
    %206 = vxpose.xlu0.b32.cont [7/16] %v94, 128
    %207 = vxpose.xlu0.b32.cont [8/16] %v95, 128
    %208 = vxpose.xlu0.b32.cont [9/16] %v96, 128
    %209 = vxpose.xlu0.b32.cont [10/16] %v97, 128
    %210 = vxpose.xlu0.b32.cont [11/16] %v98, 128
    %211 = vxpose.xlu0.b32.cont [12/16] %v99, 128
    %212 = vxpose.xlu0.b32.cont [13/16] %v100, 128
    %213 = vxpose.xlu0.b32.cont [14/16] %v101, 128
    %214 = vxpose.xlu0.b32.cont [15/16] %v102, 128
    %215 = vxpose.xlu0.b32.end [16/16] %v103, 128
    %v216 = vpop.trf.xlu0
    %v217 = vpop.trf.xlu0
    %v218 = vpop.trf.xlu0
    %v219 = vpop.trf.xlu0
    %v220 = vpop.trf.xlu0
    %v221 = vpop.trf.xlu0
    %v222 = vpop.trf.xlu0
    %v223 = vpop.trf.xlu0
    %v224 = vpop.trf.xlu0
    %v225 = vpop.trf.xlu0
    %v226 = vpop.trf.xlu0
    %v227 = vpop.trf.xlu0
    %v228 = vpop.trf.xlu0
    %v229 = vpop.trf.xlu0
    %v230 = vpop.trf.xlu0
    %v231 = vpop.trf.xlu0
    %v232 = vand.u32 2147483647, %v120
    %v233 = vand.u32 2147483647, %v152
    %v234 = vand.u32 2147483647, %v184
    %v235 = vand.u32 2147483647, %v216
    %v236 = vand.u32 2147483647, %v121
    %v237 = vand.u32 2147483647, %v153
    %v238 = vand.u32 2147483647, %v185
    %v239 = vand.u32 2147483647, %v217
    %v240 = vand.u32 2147483647, %v122
    %v241 = vand.u32 2147483647, %v154
    %v242 = vand.u32 2147483647, %v186
    %v243 = vand.u32 2147483647, %v218
    %v244 = vand.u32 2147483647, %v123
    %v245 = vand.u32 2147483647, %v155
    %v246 = vand.u32 2147483647, %v187
    %v247 = vand.u32 2147483647, %v219
    %v248 = vsub.f32 0.0, %v232
    %v249 = vsub.f32 0.0, %v233
    %v250 = vsub.f32 0.0, %v234
    %v251 = vsub.f32 0.0, %v235
    %v252 = vsub.f32 0.0, %v236
    %v253 = vsub.f32 0.0, %v237
    %v254 = vsub.f32 0.0, %v238
    %v255 = vsub.f32 0.0, %v239
    %v256 = vsub.f32 0.0, %v240
    %v257 = vsub.f32 0.0, %v241
    %v258 = vsub.f32 0.0, %v242
    %v259 = vsub.f32 0.0, %v243
    %v260 = vsub.f32 0.0, %v244
    %v261 = vsub.f32 0.0, %v245
    %v262 = vsub.f32 0.0, %v246
    %v263 = vsub.f32 0.0, %v247
    %v264 = vmul.f32 %v248, 1.442695
    %v265 = vpow.pop %v264
    %v266 = vmul.f32 %v249, 1.442695
    %v267 = vpow.pop %v266
    %v268 = vmul.f32 %v250, 1.442695
    %v269 = vpow.pop %v268
    %v270 = vmul.f32 %v251, 1.442695
    %v271 = vpow.pop %v270
    %v272 = vmul.f32 %v252, 1.442695
    %v273 = vpow.pop %v272
    %v274 = vmul.f32 %v253, 1.442695
    %v275 = vpow.pop %v274
    %v276 = vmul.f32 %v254, 1.442695
    %v277 = vpow.pop %v276
    %v278 = vmul.f32 %v255, 1.442695
    %v279 = vpow.pop %v278
    %v280 = vmul.f32 %v256, 1.442695
    %v281 = vpow.pop %v280
    %v282 = vmul.f32 %v257, 1.442695
    %v283 = vpow.pop %v282
    %v284 = vmul.f32 %v258, 1.442695
    %v285 = vpow.pop %v284
    %v286 = vmul.f32 %v259, 1.442695
    %v287 = vpow.pop %v286
    %v288 = vmul.f32 %v260, 1.442695
    %v289 = vpow.pop %v288
    %v290 = vmul.f32 %v261, 1.442695
    %v291 = vpow.pop %v290
    %v292 = vmul.f32 %v262, 1.442695
    %v293 = vpow.pop %v292
    %v294 = vmul.f32 %v263, 1.442695
    %v295 = vpow.pop %v294
    %v296 = vadd.f32 %v265, 1.0
    %v297 = vlog2.pop %v296
    %v298 = vmul.f32 %v297, 0.6931472
    %v299 = vmul.f32 -0.5, %v265
    %v300 = vadd.f32 %v299, 1.0
    %v301 = vmul.f32 %v300, %v265
    %v302 = vand.u32 2147483647, %v265
    %vm303 = vcmp.lt.f32.partialorder %v302, 0.0004427343
    %v304 = vsel %vm303, %v301, %v298
    %v305 = vadd.f32 %v267, 1.0
    %v306 = vlog2.pop %v305
    %v307 = vmul.f32 %v306, 0.6931472
    %v308 = vmul.f32 -0.5, %v267
    %v309 = vadd.f32 %v308, 1.0
    %v310 = vmul.f32 %v309, %v267
    %v311 = vand.u32 2147483647, %v267
    %vm312 = vcmp.lt.f32.partialorder %v311, 0.0004427343
    %v313 = vsel %vm312, %v310, %v307
    %v314 = vadd.f32 %v269, 1.0
    %v315 = vlog2.pop %v314
    %v316 = vmul.f32 %v315, 0.6931472
    %v317 = vmul.f32 -0.5, %v269
    %v318 = vadd.f32 %v317, 1.0
    %v319 = vmul.f32 %v318, %v269
    %v320 = vand.u32 2147483647, %v269
    %vm321 = vcmp.lt.f32.partialorder %v320, 0.0004427343
    %v322 = vsel %vm321, %v319, %v316
    %v323 = vadd.f32 %v271, 1.0
    %v324 = vlog2.pop %v323
    %v325 = vmul.f32 %v324, 0.6931472
    %v326 = vmul.f32 -0.5, %v271
    %v327 = vadd.f32 %v326, 1.0
    %v328 = vmul.f32 %v327, %v271
    %v329 = vand.u32 2147483647, %v271
    %vm330 = vcmp.lt.f32.partialorder %v329, 0.0004427343
    %v331 = vsel %vm330, %v328, %v325
    %v332 = vadd.f32 %v273, 1.0
    %v333 = vlog2.pop %v332
    %v334 = vmul.f32 %v333, 0.6931472
    %v335 = vmul.f32 -0.5, %v273
    %v336 = vadd.f32 %v335, 1.0
    %v337 = vmul.f32 %v336, %v273
    %v338 = vand.u32 2147483647, %v273
    %vm339 = vcmp.lt.f32.partialorder %v338, 0.0004427343
    %v340 = vsel %vm339, %v337, %v334
    %v341 = vadd.f32 %v275, 1.0
    %v342 = vlog2.pop %v341
    %v343 = vmul.f32 %v342, 0.6931472
    %v344 = vmul.f32 -0.5, %v275
    %v345 = vadd.f32 %v344, 1.0
    %v346 = vmul.f32 %v345, %v275
    %v347 = vand.u32 2147483647, %v275
    %vm348 = vcmp.lt.f32.partialorder %v347, 0.0004427343
    %v349 = vsel %vm348, %v346, %v343
    %v350 = vadd.f32 %v277, 1.0
    %v351 = vlog2.pop %v350
    %v352 = vmul.f32 %v351, 0.6931472
    %v353 = vmul.f32 -0.5, %v277
    %v354 = vadd.f32 %v353, 1.0
    %v355 = vmul.f32 %v354, %v277
    %v356 = vand.u32 2147483647, %v277
    %vm357 = vcmp.lt.f32.partialorder %v356, 0.0004427343
    %v358 = vsel %vm357, %v355, %v352
    %v359 = vadd.f32 %v279, 1.0
    %v360 = vlog2.pop %v359
    %v361 = vmul.f32 %v360, 0.6931472
    %v362 = vmul.f32 -0.5, %v279
    %v363 = vadd.f32 %v362, 1.0
    %v364 = vmul.f32 %v363, %v279
    %v365 = vand.u32 2147483647, %v279
    %vm366 = vcmp.lt.f32.partialorder %v365, 0.0004427343
    %v367 = vsel %vm366, %v364, %v361
    %v368 = vadd.f32 %v281, 1.0
    %v369 = vlog2.pop %v368
    %v370 = vmul.f32 %v369, 0.6931472
    %v371 = vmul.f32 -0.5, %v281
    %v372 = vadd.f32 %v371, 1.0
    %v373 = vmul.f32 %v372, %v281
    %v374 = vand.u32 2147483647, %v281
    %vm375 = vcmp.lt.f32.partialorder %v374, 0.0004427343
    %v376 = vsel %vm375, %v373, %v370
    %v377 = vadd.f32 %v283, 1.0
    %v378 = vlog2.pop %v377
    %v379 = vmul.f32 %v378, 0.6931472
    %v380 = vmul.f32 -0.5, %v283
    %v381 = vadd.f32 %v380, 1.0
    %v382 = vmul.f32 %v381, %v283
    %v383 = vand.u32 2147483647, %v283
    %vm384 = vcmp.lt.f32.partialorder %v383, 0.0004427343
    %v385 = vsel %vm384, %v382, %v379
    %v386 = vadd.f32 %v285, 1.0
    %v387 = vlog2.pop %v386
    %v388 = vmul.f32 %v387, 0.6931472
    %v389 = vmul.f32 -0.5, %v285
    %v390 = vadd.f32 %v389, 1.0
    %v391 = vmul.f32 %v390, %v285
    %v392 = vand.u32 2147483647, %v285
    %vm393 = vcmp.lt.f32.partialorder %v392, 0.0004427343
    %v394 = vsel %vm393, %v391, %v388
    %v395 = vadd.f32 %v287, 1.0
    %v396 = vlog2.pop %v395
    %v397 = vmul.f32 %v396, 0.6931472
    %v398 = vmul.f32 -0.5, %v287
    %v399 = vadd.f32 %v398, 1.0
    %v400 = vmul.f32 %v399, %v287
    %v401 = vand.u32 2147483647, %v287
    %vm402 = vcmp.lt.f32.partialorder %v401, 0.0004427343
    %v403 = vsel %vm402, %v400, %v397
    %v404 = vadd.f32 %v289, 1.0
    %v405 = vlog2.pop %v404
    %v406 = vmul.f32 %v405, 0.6931472
    %v407 = vmul.f32 -0.5, %v289
    %v408 = vadd.f32 %v407, 1.0
    %v409 = vmul.f32 %v408, %v289
    %v410 = vand.u32 2147483647, %v289
    %vm411 = vcmp.lt.f32.partialorder %v410, 0.0004427343
    %v412 = vsel %vm411, %v409, %v406
    %v413 = vadd.f32 %v291, 1.0
    %v414 = vlog2.pop %v413
    %v415 = vmul.f32 %v414, 0.6931472
    %v416 = vmul.f32 -0.5, %v291
    %v417 = vadd.f32 %v416, 1.0
    %v418 = vmul.f32 %v417, %v291
    %v419 = vand.u32 2147483647, %v291
    %vm420 = vcmp.lt.f32.partialorder %v419, 0.0004427343
    %v421 = vsel %vm420, %v418, %v415
    %v422 = vadd.f32 %v293, 1.0
    %v423 = vlog2.pop %v422
    %v424 = vmul.f32 %v423, 0.6931472
    %v425 = vmul.f32 -0.5, %v293
    %v426 = vadd.f32 %v425, 1.0
    %v427 = vmul.f32 %v426, %v293
    %v428 = vand.u32 2147483647, %v293
    %vm429 = vcmp.lt.f32.partialorder %v428, 0.0004427343
    %v430 = vsel %vm429, %v427, %v424
    %v431 = vadd.f32 %v295, 1.0
    %v432 = vlog2.pop %v431
    %v433 = vmul.f32 %v432, 0.6931472
    %v434 = vmul.f32 -0.5, %v295
    %v435 = vadd.f32 %v434, 1.0
    %v436 = vmul.f32 %v435, %v295
    %v437 = vand.u32 2147483647, %v295
    %vm438 = vcmp.lt.f32.partialorder %v437, 0.0004427343
    %v439 = vsel %vm438, %v436, %v433
    %v440 = vmax.f32 %v120, 0.0
    %v441 = vmax.f32 %v152, 0.0
    %v442 = vmax.f32 %v184, 0.0
    %v443 = vmax.f32 %v216, 0.0
    %v444 = vmax.f32 %v121, 0.0
    %v445 = vmax.f32 %v153, 0.0
    %v446 = vmax.f32 %v185, 0.0
    %v447 = vmax.f32 %v217, 0.0
    %v448 = vmax.f32 %v122, 0.0
    %v449 = vmax.f32 %v154, 0.0
    %v450 = vmax.f32 %v186, 0.0
    %v451 = vmax.f32 %v218, 0.0
    %v452 = vmax.f32 %v123, 0.0
    %v453 = vmax.f32 %v155, 0.0
    %v454 = vmax.f32 %v187, 0.0
    %v455 = vmax.f32 %v219, 0.0
    %v456 = vadd.f32 %v440, %v304
    %v457 = vadd.f32 %v441, %v313
    %v458 = vadd.f32 %v442, %v322
    %v459 = vadd.f32 %v443, %v331
    %v460 = vadd.f32 %v444, %v340
    %v461 = vadd.f32 %v445, %v349
    %v462 = vadd.f32 %v446, %v358
    %v463 = vadd.f32 %v447, %v367
    %v464 = vadd.f32 %v448, %v376
    %v465 = vadd.f32 %v449, %v385
    %v466 = vadd.f32 %v450, %v394
    %v467 = vadd.f32 %v451, %v403
    %v468 = vadd.f32 %v452, %v412
    %v469 = vadd.f32 %v453, %v421
    %v470 = vadd.f32 %v454, %v430
    %v471 = vadd.f32 %v455, %v439
    %v472 = vsub.f32 %v456, 0.6931472
    %v473 = vsub.f32 %v457, 0.6931472
    %v474 = vsub.f32 %v458, 0.6931472
    %v475 = vsub.f32 %v459, 0.6931472
    %v476 = vsub.f32 %v460, 0.6931472
    %v477 = vsub.f32 %v461, 0.6931472
    %v478 = vsub.f32 %v462, 0.6931472
    %v479 = vsub.f32 %v463, 0.6931472
    %v480 = vsub.f32 %v464, 0.6931472
    %v481 = vsub.f32 %v465, 0.6931472
    %v482 = vsub.f32 %v466, 0.6931472
    %v483 = vsub.f32 %v467, 0.6931472
    %v484 = vsub.f32 %v468, 0.6931472
    %v485 = vsub.f32 %v469, 0.6931472
    %v486 = vsub.f32 %v470, 0.6931472
    %v487 = vsub.f32 %v471, 0.6931472
    %v488 = vpack.c.bf16 %v476, %v472
    %v489 = vpack.c.bf16 %v477, %v473
    %v490 = vpack.c.bf16 %v478, %v474
    %v491 = vpack.c.bf16 %v479, %v475
    %v492 = vpack.c.bf16 %v484, %v480
    %v493 = vpack.c.bf16 %v485, %v481
    %v494 = vpack.c.bf16 %v486, %v482
    %v495 = vpack.c.bf16 %v487, %v483
    %v496 = vld [vmem:[%s1] sm:$0xf]
    %v497 = vld [vmem:[%s1 + $0x4] sm:$0xf]
    %v498 = vld [vmem:[%s1 + $0x8] sm:$0xf]
    %v499 = vld [vmem:[%s1 + $0xc] sm:$0xf]
    %v500 = vld [vmem:[%s2] sm:$0xff]
    %v501 = vld [vmem:[%s2 + $0x8] sm:$0xff]
    %v502 = vld [vmem:[%s2 + $0x10] sm:$0xff]
    %v503 = vld [vmem:[%s2 + $0x18] sm:$0xff]
    %505 = vset.pattern.permute.xlu0 0
    %506 = vperm.xlu0 %505, %v500
    %v507 = vpop.permute.xlu0 %506
    %510 = vset.pattern.permute.xlu0 0
    %511 = vperm.xlu0 %510, %v501
    %v512 = vpop.permute.xlu0 %511
    %515 = vset.pattern.permute.xlu0 0
    %516 = vperm.xlu0 %515, %v502
    %v517 = vpop.permute.xlu0 %516
    %520 = vset.pattern.permute.xlu0 0
    %521 = vperm.xlu0 %520, %v503
    %v522 = vpop.permute.xlu0 %521
    %v528 = vunpack.c.l.b16 %v496
    %v529 = vunpack.c.l.b16 %v497
    %v530 = vunpack.c.l.b16 %v498
    %v531 = vunpack.c.l.b16 %v499
    %v532 = vpack.c.b16 %v529, %v528
    %v533 = vpack.c.b16 %v531, %v530
    %vm534 = vcmask 261120
    %v536 = vsel %vm534, %v532, 0
    %v539 = vsel %vm534, %v533, 0
    %541 = vmatpush.bf16.msra.mxu0 0
    %542 = vmatpush.bf16.msra.mxu0 0
    %543 = vmatpush.bf16.msra.mxu0 0
    %544 = vmatpush.bf16.msra.mxu0 0
    %545 = vmatpush.bf16.msra.mxu0 0
    %546 = vmatpush.bf16.msra.mxu0 0
    %547 = vmatpush.bf16.msra.mxu0 %v492
    %548 = vmatpush.bf16.msra.mxu0 %v488
    %549 = vmatmul.bf16.gmra.mxu0 %v536
    %v550 = vpop.f32.mrf.mxu0
    %v551 = vadd.f32 %v507, %v550
    %v552 = vpop.f32.mrf.mxu0
    %v553 = vadd.f32 %v512, %v552
    %554 = vmatmul.bf16.gmra.mxu0 %v539
    %v555 = vpop.f32.mrf.mxu0
    %v556 = vadd.f32 %v517, %v555
    %v557 = vpop.f32.mrf.mxu0
    %v558 = vadd.f32 %v522, %v557
    %559 = vdwg.mxu0
    %560 = vmatpush.bf16.msra.mxu0 0
    %561 = vmatpush.bf16.msra.mxu0 0
    %562 = vmatpush.bf16.msra.mxu0 0
    %563 = vmatpush.bf16.msra.mxu0 0
    %564 = vmatpush.bf16.msra.mxu0 0
    %565 = vmatpush.bf16.msra.mxu0 0
    %566 = vmatpush.bf16.msra.mxu0 %v493
    %567 = vmatpush.bf16.msra.mxu0 %v489
    %568 = vmatmul.bf16.gmra.mxu0 %v536
    %v569 = vpop.f32.mrf.mxu0
    %v570 = vadd.f32 %v507, %v569
    %v571 = vpop.f32.mrf.mxu0
    %v572 = vadd.f32 %v512, %v571
    %573 = vmatmul.bf16.gmra.mxu0 %v539
    %v574 = vpop.f32.mrf.mxu0
    %v575 = vadd.f32 %v517, %v574
    %v576 = vpop.f32.mrf.mxu0
    %v577 = vadd.f32 %v522, %v576
    %578 = vdwg.mxu0
    %579 = vmatpush.bf16.msra.mxu0 0
    %580 = vmatpush.bf16.msra.mxu0 0
    %581 = vmatpush.bf16.msra.mxu0 0
    %582 = vmatpush.bf16.msra.mxu0 0
    %583 = vmatpush.bf16.msra.mxu0 0
    %584 = vmatpush.bf16.msra.mxu0 0
    %585 = vmatpush.bf16.msra.mxu0 %v494
    %586 = vmatpush.bf16.msra.mxu0 %v490
    %587 = vmatmul.bf16.gmra.mxu0 %v536
    %v588 = vpop.f32.mrf.mxu0
    %v589 = vadd.f32 %v507, %v588
    %v590 = vpop.f32.mrf.mxu0
    %v591 = vadd.f32 %v512, %v590
    %592 = vmatmul.bf16.gmra.mxu0 %v539
    %v593 = vpop.f32.mrf.mxu0
    %v594 = vadd.f32 %v517, %v593
    %v595 = vpop.f32.mrf.mxu0
    %v596 = vadd.f32 %v522, %v595
    %597 = vdwg.mxu0
    %598 = vmatpush.bf16.msra.mxu0 0
    %599 = vmatpush.bf16.msra.mxu0 0
    %600 = vmatpush.bf16.msra.mxu0 0
    %601 = vmatpush.bf16.msra.mxu0 0
    %602 = vmatpush.bf16.msra.mxu0 0
    %603 = vmatpush.bf16.msra.mxu0 0
    %604 = vmatpush.bf16.msra.mxu0 %v495
    %605 = vmatpush.bf16.msra.mxu0 %v491
    %606 = vmatmul.bf16.gmra.mxu0 %v536
    %v607 = vpop.f32.mrf.mxu0
    %v608 = vadd.f32 %v507, %v607
    %v609 = vpop.f32.mrf.mxu0
    %v610 = vadd.f32 %v512, %v609
    %611 = vmatmul.bf16.gmra.mxu0 %v539
    %v612 = vpop.f32.mrf.mxu0
    %v613 = vadd.f32 %v517, %v612
    %v614 = vpop.f32.mrf.mxu0
    %v615 = vadd.f32 %v522, %v614
    %616 = vdwg.mxu0
    %v617 = vand.u32 2147483647, %v551
    %v618 = vand.u32 2147483647, %v570
    %v619 = vand.u32 2147483647, %v589
    %v620 = vand.u32 2147483647, %v608
    %v621 = vand.u32 2147483647, %v553
    %v622 = vand.u32 2147483647, %v572
    %v623 = vand.u32 2147483647, %v591
    %v624 = vand.u32 2147483647, %v610
    %v625 = vand.u32 2147483647, %v556
    %v626 = vand.u32 2147483647, %v575
    %v627 = vand.u32 2147483647, %v594
    %v628 = vand.u32 2147483647, %v613
    %v629 = vand.u32 2147483647, %v558
    %v630 = vand.u32 2147483647, %v577
    %v631 = vand.u32 2147483647, %v596
    %v632 = vand.u32 2147483647, %v615
    %v633 = vsub.f32 0.0, %v617
    %v634 = vsub.f32 0.0, %v618
    %v635 = vsub.f32 0.0, %v619
    %v636 = vsub.f32 0.0, %v620
    %v637 = vsub.f32 0.0, %v621
    %v638 = vsub.f32 0.0, %v622
    %v639 = vsub.f32 0.0, %v623
    %v640 = vsub.f32 0.0, %v624
    %v641 = vsub.f32 0.0, %v625
    %v642 = vsub.f32 0.0, %v626
    %v643 = vsub.f32 0.0, %v627
    %v644 = vsub.f32 0.0, %v628
    %v645 = vsub.f32 0.0, %v629
    %v646 = vsub.f32 0.0, %v630
    %v647 = vsub.f32 0.0, %v631
    %v648 = vsub.f32 0.0, %v632
    %v649 = vmul.f32 %v633, 1.442695
    %v650 = vpow.pop %v649
    %v651 = vmul.f32 %v634, 1.442695
    %v652 = vpow.pop %v651
    %v653 = vmul.f32 %v635, 1.442695
    %v654 = vpow.pop %v653
    %v655 = vmul.f32 %v636, 1.442695
    %v656 = vpow.pop %v655
    %v657 = vmul.f32 %v637, 1.442695
    %v658 = vpow.pop %v657
    %v659 = vmul.f32 %v638, 1.442695
    %v660 = vpow.pop %v659
    %v661 = vmul.f32 %v639, 1.442695
    %v662 = vpow.pop %v661
    %v663 = vmul.f32 %v640, 1.442695
    %v664 = vpow.pop %v663
    %v665 = vmul.f32 %v641, 1.442695
    %v666 = vpow.pop %v665
    %v667 = vmul.f32 %v642, 1.442695
    %v668 = vpow.pop %v667
    %v669 = vmul.f32 %v643, 1.442695
    %v670 = vpow.pop %v669
    %v671 = vmul.f32 %v644, 1.442695
    %v672 = vpow.pop %v671
    %v673 = vmul.f32 %v645, 1.442695
    %v674 = vpow.pop %v673
    %v675 = vmul.f32 %v646, 1.442695
    %v676 = vpow.pop %v675
    %v677 = vmul.f32 %v647, 1.442695
    %v678 = vpow.pop %v677
    %v679 = vmul.f32 %v648, 1.442695
    %v680 = vpow.pop %v679
    %v681 = vadd.f32 %v650, 1.0
    %v682 = vlog2.pop %v681
    %v683 = vmul.f32 %v682, 0.6931472
    %v684 = vmul.f32 -0.5, %v650
    %v685 = vadd.f32 %v684, 1.0
    %v686 = vmul.f32 %v685, %v650
    %v687 = vand.u32 2147483647, %v650
    %vm688 = vcmp.lt.f32.partialorder %v687, 0.0004427343
    %v689 = vsel %vm688, %v686, %v683
    %v690 = vadd.f32 %v652, 1.0
    %v691 = vlog2.pop %v690
    %v692 = vmul.f32 %v691, 0.6931472
    %v693 = vmul.f32 -0.5, %v652
    %v694 = vadd.f32 %v693, 1.0
    %v695 = vmul.f32 %v694, %v652
    %v696 = vand.u32 2147483647, %v652
    %vm697 = vcmp.lt.f32.partialorder %v696, 0.0004427343
    %v698 = vsel %vm697, %v695, %v692
    %v699 = vadd.f32 %v654, 1.0
    %v700 = vlog2.pop %v699
    %v701 = vmul.f32 %v700, 0.6931472
    %v702 = vmul.f32 -0.5, %v654
    %v703 = vadd.f32 %v702, 1.0
    %v704 = vmul.f32 %v703, %v654
    %v705 = vand.u32 2147483647, %v654
    %vm706 = vcmp.lt.f32.partialorder %v705, 0.0004427343
    %v707 = vsel %vm706, %v704, %v701
    %v708 = vadd.f32 %v656, 1.0
    %v709 = vlog2.pop %v708
    %v710 = vmul.f32 %v709, 0.6931472
    %v711 = vmul.f32 -0.5, %v656
    %v712 = vadd.f32 %v711, 1.0
    %v713 = vmul.f32 %v712, %v656
    %v714 = vand.u32 2147483647, %v656
    %vm715 = vcmp.lt.f32.partialorder %v714, 0.0004427343
    %v716 = vsel %vm715, %v713, %v710
    %v717 = vadd.f32 %v658, 1.0
    %v718 = vlog2.pop %v717
    %v719 = vmul.f32 %v718, 0.6931472
    %v720 = vmul.f32 -0.5, %v658
    %v721 = vadd.f32 %v720, 1.0
    %v722 = vmul.f32 %v721, %v658
    %v723 = vand.u32 2147483647, %v658
    %vm724 = vcmp.lt.f32.partialorder %v723, 0.0004427343
    %v725 = vsel %vm724, %v722, %v719
    %v726 = vadd.f32 %v660, 1.0
    %v727 = vlog2.pop %v726
    %v728 = vmul.f32 %v727, 0.6931472
    %v729 = vmul.f32 -0.5, %v660
    %v730 = vadd.f32 %v729, 1.0
    %v731 = vmul.f32 %v730, %v660
    %v732 = vand.u32 2147483647, %v660
    %vm733 = vcmp.lt.f32.partialorder %v732, 0.0004427343
    %v734 = vsel %vm733, %v731, %v728
    %v735 = vadd.f32 %v662, 1.0
    %v736 = vlog2.pop %v735
    %v737 = vmul.f32 %v736, 0.6931472
    %v738 = vmul.f32 -0.5, %v662
    %v739 = vadd.f32 %v738, 1.0
    %v740 = vmul.f32 %v739, %v662
    %v741 = vand.u32 2147483647, %v662
    %vm742 = vcmp.lt.f32.partialorder %v741, 0.0004427343
    %v743 = vsel %vm742, %v740, %v737
    %v744 = vadd.f32 %v664, 1.0
    %v745 = vlog2.pop %v744
    %v746 = vmul.f32 %v745, 0.6931472
    %v747 = vmul.f32 -0.5, %v664
    %v748 = vadd.f32 %v747, 1.0
    %v749 = vmul.f32 %v748, %v664
    %v750 = vand.u32 2147483647, %v664
    %vm751 = vcmp.lt.f32.partialorder %v750, 0.0004427343
    %v752 = vsel %vm751, %v749, %v746
    %v753 = vadd.f32 %v666, 1.0
    %v754 = vlog2.pop %v753
    %v755 = vmul.f32 %v754, 0.6931472
    %v756 = vmul.f32 -0.5, %v666
    %v757 = vadd.f32 %v756, 1.0
    %v758 = vmul.f32 %v757, %v666
    %v759 = vand.u32 2147483647, %v666
    %vm760 = vcmp.lt.f32.partialorder %v759, 0.0004427343
    %v761 = vsel %vm760, %v758, %v755
    %v762 = vadd.f32 %v668, 1.0
    %v763 = vlog2.pop %v762
    %v764 = vmul.f32 %v763, 0.6931472
    %v765 = vmul.f32 -0.5, %v668
    %v766 = vadd.f32 %v765, 1.0
    %v767 = vmul.f32 %v766, %v668
    %v768 = vand.u32 2147483647, %v668
    %vm769 = vcmp.lt.f32.partialorder %v768, 0.0004427343
    %v770 = vsel %vm769, %v767, %v764
    %v771 = vadd.f32 %v670, 1.0
    %v772 = vlog2.pop %v771
    %v773 = vmul.f32 %v772, 0.6931472
    %v774 = vmul.f32 -0.5, %v670
    %v775 = vadd.f32 %v774, 1.0
    %v776 = vmul.f32 %v775, %v670
    %v777 = vand.u32 2147483647, %v670
    %vm778 = vcmp.lt.f32.partialorder %v777, 0.0004427343
    %v779 = vsel %vm778, %v776, %v773
    %v780 = vadd.f32 %v672, 1.0
    %v781 = vlog2.pop %v780
    %v782 = vmul.f32 %v781, 0.6931472
    %v783 = vmul.f32 -0.5, %v672
    %v784 = vadd.f32 %v783, 1.0
    %v785 = vmul.f32 %v784, %v672
    %v786 = vand.u32 2147483647, %v672
    %vm787 = vcmp.lt.f32.partialorder %v786, 0.0004427343
    %v788 = vsel %vm787, %v785, %v782
    %v789 = vadd.f32 %v674, 1.0
    %v790 = vlog2.pop %v789
    %v791 = vmul.f32 %v790, 0.6931472
    %v792 = vmul.f32 -0.5, %v674
    %v793 = vadd.f32 %v792, 1.0
    %v794 = vmul.f32 %v793, %v674
    %v795 = vand.u32 2147483647, %v674
    %vm796 = vcmp.lt.f32.partialorder %v795, 0.0004427343
    %v797 = vsel %vm796, %v794, %v791
    %v798 = vadd.f32 %v676, 1.0
    %v799 = vlog2.pop %v798
    %v800 = vmul.f32 %v799, 0.6931472
    %v801 = vmul.f32 -0.5, %v676
    %v802 = vadd.f32 %v801, 1.0
    %v803 = vmul.f32 %v802, %v676
    %v804 = vand.u32 2147483647, %v676
    %vm805 = vcmp.lt.f32.partialorder %v804, 0.0004427343
    %v806 = vsel %vm805, %v803, %v800
    %v807 = vadd.f32 %v678, 1.0
    %v808 = vlog2.pop %v807
    %v809 = vmul.f32 %v808, 0.6931472
    %v810 = vmul.f32 -0.5, %v678
    %v811 = vadd.f32 %v810, 1.0
    %v812 = vmul.f32 %v811, %v678
    %v813 = vand.u32 2147483647, %v678
    %vm814 = vcmp.lt.f32.partialorder %v813, 0.0004427343
    %v815 = vsel %vm814, %v812, %v809
    %v816 = vadd.f32 %v680, 1.0
    %v817 = vlog2.pop %v816
    %v818 = vmul.f32 %v817, 0.6931472
    %v819 = vmul.f32 -0.5, %v680
    %v820 = vadd.f32 %v819, 1.0
    %v821 = vmul.f32 %v820, %v680
    %v822 = vand.u32 2147483647, %v680
    %vm823 = vcmp.lt.f32.partialorder %v822, 0.0004427343
    %v824 = vsel %vm823, %v821, %v818
    %v825 = vmax.f32 %v551, 0.0
    %v826 = vmax.f32 %v570, 0.0
    %v827 = vmax.f32 %v589, 0.0
    %v828 = vmax.f32 %v608, 0.0
    %v829 = vmax.f32 %v553, 0.0
    %v830 = vmax.f32 %v572, 0.0
    %v831 = vmax.f32 %v591, 0.0
    %v832 = vmax.f32 %v610, 0.0
    %v833 = vmax.f32 %v556, 0.0
    %v834 = vmax.f32 %v575, 0.0
    %v835 = vmax.f32 %v594, 0.0
    %v836 = vmax.f32 %v613, 0.0
    %v837 = vmax.f32 %v558, 0.0
    %v838 = vmax.f32 %v577, 0.0
    %v839 = vmax.f32 %v596, 0.0
    %v840 = vmax.f32 %v615, 0.0
    %v841 = vadd.f32 %v825, %v689
    %v842 = vadd.f32 %v826, %v698
    %v843 = vadd.f32 %v827, %v707
    %v844 = vadd.f32 %v828, %v716
    %v845 = vadd.f32 %v829, %v725
    %v846 = vadd.f32 %v830, %v734
    %v847 = vadd.f32 %v831, %v743
    %v848 = vadd.f32 %v832, %v752
    %v849 = vadd.f32 %v833, %v761
    %v850 = vadd.f32 %v834, %v770
    %v851 = vadd.f32 %v835, %v779
    %v852 = vadd.f32 %v836, %v788
    %v853 = vadd.f32 %v837, %v797
    %v854 = vadd.f32 %v838, %v806
    %v855 = vadd.f32 %v839, %v815
    %v856 = vadd.f32 %v840, %v824
    %v857 = vsub.f32 %v841, 0.6931472
    %v858 = vsub.f32 %v842, 0.6931472
    %v859 = vsub.f32 %v843, 0.6931472
    %v860 = vsub.f32 %v844, 0.6931472
    %v861 = vsub.f32 %v845, 0.6931472
    %v862 = vsub.f32 %v846, 0.6931472
    %v863 = vsub.f32 %v847, 0.6931472
    %v864 = vsub.f32 %v848, 0.6931472
    %v865 = vsub.f32 %v849, 0.6931472
    %v866 = vsub.f32 %v850, 0.6931472
    %v867 = vsub.f32 %v851, 0.6931472
    %v868 = vsub.f32 %v852, 0.6931472
    %v869 = vsub.f32 %v853, 0.6931472
    %v870 = vsub.f32 %v854, 0.6931472
    %v871 = vsub.f32 %v855, 0.6931472
    %v872 = vsub.f32 %v856, 0.6931472
    %v873 = vpack.c.bf16 %v861, %v857
    %v874 = vpack.c.bf16 %v862, %v858
    %v875 = vpack.c.bf16 %v863, %v859
    %v876 = vpack.c.bf16 %v864, %v860
    %v877 = vpack.c.bf16 %v869, %v865
    %v878 = vpack.c.bf16 %v870, %v866
    %v879 = vpack.c.bf16 %v871, %v867
    %v880 = vpack.c.bf16 %v872, %v868
    %v881 = vld [vmem:[%s3] sm:$0xf]
    %v882 = vld [vmem:[%s3 + $0x4] sm:$0xf]
    %v883 = vld [vmem:[%s3 + $0x8] sm:$0xf]
    %v884 = vld [vmem:[%s3 + $0xc] sm:$0xf]
    %v885 = vld [vmem:[%s4] sm:$0xff]
    %v886 = vld [vmem:[%s4 + $0x8] sm:$0xff]
    %v887 = vld [vmem:[%s4 + $0x10] sm:$0xff]
    %v888 = vld [vmem:[%s4 + $0x18] sm:$0xff]
    %890 = vset.pattern.permute.xlu0 0
    %891 = vperm.xlu0 %890, %v885
    %v892 = vpop.permute.xlu0 %891
    %895 = vset.pattern.permute.xlu0 0
    %896 = vperm.xlu0 %895, %v886
    %v897 = vpop.permute.xlu0 %896
    %900 = vset.pattern.permute.xlu0 0
    %901 = vperm.xlu0 %900, %v887
    %v902 = vpop.permute.xlu0 %901
    %905 = vset.pattern.permute.xlu0 0
    %906 = vperm.xlu0 %905, %v888
    %v907 = vpop.permute.xlu0 %906
    %v913 = vunpack.c.l.b16 %v881
    %v914 = vunpack.c.l.b16 %v882
    %v915 = vunpack.c.l.b16 %v883
    %v916 = vunpack.c.l.b16 %v884
    %v917 = vpack.c.b16 %v914, %v913
    %v918 = vpack.c.b16 %v916, %v915
    %v920 = vsel %vm534, %v917, 0
    %v923 = vsel %vm534, %v918, 0
    %925 = vmatpush.bf16.msra.mxu0 0
    %926 = vmatpush.bf16.msra.mxu0 0
    %927 = vmatpush.bf16.msra.mxu0 0
    %928 = vmatpush.bf16.msra.mxu0 0
    %929 = vmatpush.bf16.msra.mxu0 0
    %930 = vmatpush.bf16.msra.mxu0 0
    %931 = vmatpush.bf16.msra.mxu0 %v877
    %932 = vmatpush.bf16.msra.mxu0 %v873
    %933 = vmatmul.bf16.gmra.mxu0 %v920
    %v934 = vpop.f32.mrf.mxu0
    %v935 = vadd.f32 %v892, %v934
    %v936 = vpop.f32.mrf.mxu0
    %v937 = vadd.f32 %v897, %v936
    %938 = vmatmul.bf16.gmra.mxu0 %v923
    %v939 = vpop.f32.mrf.mxu0
    %v940 = vadd.f32 %v902, %v939
    %v941 = vpop.f32.mrf.mxu0
    %v942 = vadd.f32 %v907, %v941
    %943 = vdwg.mxu0
    %944 = vmatpush.bf16.msra.mxu0 0
    %945 = vmatpush.bf16.msra.mxu0 0
    %946 = vmatpush.bf16.msra.mxu0 0
    %947 = vmatpush.bf16.msra.mxu0 0
    %948 = vmatpush.bf16.msra.mxu0 0
    %949 = vmatpush.bf16.msra.mxu0 0
    %950 = vmatpush.bf16.msra.mxu0 %v878
    %951 = vmatpush.bf16.msra.mxu0 %v874
    %952 = vmatmul.bf16.gmra.mxu0 %v920
    %v953 = vpop.f32.mrf.mxu0
    %v954 = vadd.f32 %v892, %v953
    %v955 = vpop.f32.mrf.mxu0
    %v956 = vadd.f32 %v897, %v955
    %957 = vmatmul.bf16.gmra.mxu0 %v923
    %v958 = vpop.f32.mrf.mxu0
    %v959 = vadd.f32 %v902, %v958
    %v960 = vpop.f32.mrf.mxu0
    %v961 = vadd.f32 %v907, %v960
    %962 = vdwg.mxu0
    %963 = vmatpush.bf16.msra.mxu0 0
    %964 = vmatpush.bf16.msra.mxu0 0
    %965 = vmatpush.bf16.msra.mxu0 0
    %966 = vmatpush.bf16.msra.mxu0 0
    %967 = vmatpush.bf16.msra.mxu0 0
    %968 = vmatpush.bf16.msra.mxu0 0
    %969 = vmatpush.bf16.msra.mxu0 %v879
    %970 = vmatpush.bf16.msra.mxu0 %v875
    %971 = vmatmul.bf16.gmra.mxu0 %v920
    %v972 = vpop.f32.mrf.mxu0
    %v973 = vadd.f32 %v892, %v972
    %v974 = vpop.f32.mrf.mxu0
    %v975 = vadd.f32 %v897, %v974
    %976 = vmatmul.bf16.gmra.mxu0 %v923
    %v977 = vpop.f32.mrf.mxu0
    %v978 = vadd.f32 %v902, %v977
    %v979 = vpop.f32.mrf.mxu0
    %v980 = vadd.f32 %v907, %v979
    %981 = vdwg.mxu0
    %982 = vmatpush.bf16.msra.mxu0 0
    %983 = vmatpush.bf16.msra.mxu0 0
    %984 = vmatpush.bf16.msra.mxu0 0
    %985 = vmatpush.bf16.msra.mxu0 0
    %986 = vmatpush.bf16.msra.mxu0 0
    %987 = vmatpush.bf16.msra.mxu0 0
    %988 = vmatpush.bf16.msra.mxu0 %v880
    %989 = vmatpush.bf16.msra.mxu0 %v876
    %990 = vmatmul.bf16.gmra.mxu0 %v920
    %v991 = vpop.f32.mrf.mxu0
    %v992 = vadd.f32 %v892, %v991
    %v993 = vpop.f32.mrf.mxu0
    %v994 = vadd.f32 %v897, %v993
    %995 = vmatmul.bf16.gmra.mxu0 %v923
    %v996 = vpop.f32.mrf.mxu0
    %v997 = vadd.f32 %v902, %v996
    %v998 = vpop.f32.mrf.mxu0
    %v999 = vadd.f32 %v907, %v998
    %1000 = vdwg.mxu0
    %v1001 = vadd.f32 %v120, %v935
    %v1002 = vadd.f32 %v152, %v954
    %v1003 = vadd.f32 %v184, %v973
    %v1004 = vadd.f32 %v216, %v992
    %v1005 = vadd.f32 %v121, %v937
    %v1006 = vadd.f32 %v153, %v956
    %v1007 = vadd.f32 %v185, %v975
    %v1008 = vadd.f32 %v217, %v994
    %v1009 = vadd.f32 %v122, %v940
    %v1010 = vadd.f32 %v154, %v959
    %v1011 = vadd.f32 %v186, %v978
    %v1012 = vadd.f32 %v218, %v997
    %v1013 = vadd.f32 %v123, %v942
    %v1014 = vadd.f32 %v155, %v961
    %v1015 = vadd.f32 %v187, %v980
    %v1016 = vadd.f32 %v219, %v999
    %v1017 = vand.u32 2147483647, %v1001
    %v1018 = vand.u32 2147483647, %v1002
    %v1019 = vand.u32 2147483647, %v1003
    %v1020 = vand.u32 2147483647, %v1004
    %v1021 = vand.u32 2147483647, %v1005
    %v1022 = vand.u32 2147483647, %v1006
    %v1023 = vand.u32 2147483647, %v1007
    %v1024 = vand.u32 2147483647, %v1008
    %v1025 = vand.u32 2147483647, %v1009
    %v1026 = vand.u32 2147483647, %v1010
    %v1027 = vand.u32 2147483647, %v1011
    %v1028 = vand.u32 2147483647, %v1012
    %v1029 = vand.u32 2147483647, %v1013
    %v1030 = vand.u32 2147483647, %v1014
    %v1031 = vand.u32 2147483647, %v1015
    %v1032 = vand.u32 2147483647, %v1016
    %v1033 = vsub.f32 0.0, %v1017
    %v1034 = vsub.f32 0.0, %v1018
    %v1035 = vsub.f32 0.0, %v1019
    %v1036 = vsub.f32 0.0, %v1020
    %v1037 = vsub.f32 0.0, %v1021
    %v1038 = vsub.f32 0.0, %v1022
    %v1039 = vsub.f32 0.0, %v1023
    %v1040 = vsub.f32 0.0, %v1024
    %v1041 = vsub.f32 0.0, %v1025
    %v1042 = vsub.f32 0.0, %v1026
    %v1043 = vsub.f32 0.0, %v1027
    %v1044 = vsub.f32 0.0, %v1028
    %v1045 = vsub.f32 0.0, %v1029
    %v1046 = vsub.f32 0.0, %v1030
    %v1047 = vsub.f32 0.0, %v1031
    %v1048 = vsub.f32 0.0, %v1032
    %v1049 = vmul.f32 %v1033, 1.442695
    %v1050 = vpow.pop %v1049
    %v1051 = vmul.f32 %v1034, 1.442695
    %v1052 = vpow.pop %v1051
    %v1053 = vmul.f32 %v1035, 1.442695
    %v1054 = vpow.pop %v1053
    %v1055 = vmul.f32 %v1036, 1.442695
    %v1056 = vpow.pop %v1055
    %v1057 = vmul.f32 %v1037, 1.442695
    %v1058 = vpow.pop %v1057
    %v1059 = vmul.f32 %v1038, 1.442695
    %v1060 = vpow.pop %v1059
    %v1061 = vmul.f32 %v1039, 1.442695
    %v1062 = vpow.pop %v1061
    %v1063 = vmul.f32 %v1040, 1.442695
    %v1064 = vpow.pop %v1063
    %v1065 = vmul.f32 %v1041, 1.442695
    %v1066 = vpow.pop %v1065
    %v1067 = vmul.f32 %v1042, 1.442695
    %v1068 = vpow.pop %v1067
    %v1069 = vmul.f32 %v1043, 1.442695
    %v1070 = vpow.pop %v1069
    %v1071 = vmul.f32 %v1044, 1.442695
    %v1072 = vpow.pop %v1071
    %v1073 = vmul.f32 %v1045, 1.442695
    %v1074 = vpow.pop %v1073
    %v1075 = vmul.f32 %v1046, 1.442695
    %v1076 = vpow.pop %v1075
    %v1077 = vmul.f32 %v1047, 1.442695
    %v1078 = vpow.pop %v1077
    %v1079 = vmul.f32 %v1048, 1.442695
    %v1080 = vpow.pop %v1079
    %v1081 = vadd.f32 %v1050, 1.0
    %v1082 = vlog2.pop %v1081
    %v1083 = vmul.f32 %v1082, 0.6931472
    %v1084 = vmul.f32 -0.5, %v1050
    %v1085 = vadd.f32 %v1084, 1.0
    %v1086 = vmul.f32 %v1085, %v1050
    %v1087 = vand.u32 2147483647, %v1050
    %vm1088 = vcmp.lt.f32.partialorder %v1087, 0.0004427343
    %v1089 = vsel %vm1088, %v1086, %v1083
    %v1090 = vadd.f32 %v1052, 1.0
    %v1091 = vlog2.pop %v1090
    %v1092 = vmul.f32 %v1091, 0.6931472
    %v1093 = vmul.f32 -0.5, %v1052
    %v1094 = vadd.f32 %v1093, 1.0
    %v1095 = vmul.f32 %v1094, %v1052
    %v1096 = vand.u32 2147483647, %v1052
    %vm1097 = vcmp.lt.f32.partialorder %v1096, 0.0004427343
    %v1098 = vsel %vm1097, %v1095, %v1092
    %v1099 = vadd.f32 %v1054, 1.0
    %v1100 = vlog2.pop %v1099
    %v1101 = vmul.f32 %v1100, 0.6931472
    %v1102 = vmul.f32 -0.5, %v1054
    %v1103 = vadd.f32 %v1102, 1.0
    %v1104 = vmul.f32 %v1103, %v1054
    %v1105 = vand.u32 2147483647, %v1054
    %vm1106 = vcmp.lt.f32.partialorder %v1105, 0.0004427343
    %v1107 = vsel %vm1106, %v1104, %v1101
    %v1108 = vadd.f32 %v1056, 1.0
    %v1109 = vlog2.pop %v1108
    %v1110 = vmul.f32 %v1109, 0.6931472
    %v1111 = vmul.f32 -0.5, %v1056
    %v1112 = vadd.f32 %v1111, 1.0
    %v1113 = vmul.f32 %v1112, %v1056
    %v1114 = vand.u32 2147483647, %v1056
    %vm1115 = vcmp.lt.f32.partialorder %v1114, 0.0004427343
    %v1116 = vsel %vm1115, %v1113, %v1110
    %v1117 = vadd.f32 %v1058, 1.0
    %v1118 = vlog2.pop %v1117
    %v1119 = vmul.f32 %v1118, 0.6931472
    %v1120 = vmul.f32 -0.5, %v1058
    %v1121 = vadd.f32 %v1120, 1.0
    %v1122 = vmul.f32 %v1121, %v1058
    %v1123 = vand.u32 2147483647, %v1058
    %vm1124 = vcmp.lt.f32.partialorder %v1123, 0.0004427343
    %v1125 = vsel %vm1124, %v1122, %v1119
    %v1126 = vadd.f32 %v1060, 1.0
    %v1127 = vlog2.pop %v1126
    %v1128 = vmul.f32 %v1127, 0.6931472
    %v1129 = vmul.f32 -0.5, %v1060
    %v1130 = vadd.f32 %v1129, 1.0
    %v1131 = vmul.f32 %v1130, %v1060
    %v1132 = vand.u32 2147483647, %v1060
    %vm1133 = vcmp.lt.f32.partialorder %v1132, 0.0004427343
    %v1134 = vsel %vm1133, %v1131, %v1128
    %v1135 = vadd.f32 %v1062, 1.0
    %v1136 = vlog2.pop %v1135
    %v1137 = vmul.f32 %v1136, 0.6931472
    %v1138 = vmul.f32 -0.5, %v1062
    %v1139 = vadd.f32 %v1138, 1.0
    %v1140 = vmul.f32 %v1139, %v1062
    %v1141 = vand.u32 2147483647, %v1062
    %vm1142 = vcmp.lt.f32.partialorder %v1141, 0.0004427343
    %v1143 = vsel %vm1142, %v1140, %v1137
    %v1144 = vadd.f32 %v1064, 1.0
    %v1145 = vlog2.pop %v1144
    %v1146 = vmul.f32 %v1145, 0.6931472
    %v1147 = vmul.f32 -0.5, %v1064
    %v1148 = vadd.f32 %v1147, 1.0
    %v1149 = vmul.f32 %v1148, %v1064
    %v1150 = vand.u32 2147483647, %v1064
    %vm1151 = vcmp.lt.f32.partialorder %v1150, 0.0004427343
    %v1152 = vsel %vm1151, %v1149, %v1146
    %v1153 = vadd.f32 %v1066, 1.0
    %v1154 = vlog2.pop %v1153
    %v1155 = vmul.f32 %v1154, 0.6931472
    %v1156 = vmul.f32 -0.5, %v1066
    %v1157 = vadd.f32 %v1156, 1.0
    %v1158 = vmul.f32 %v1157, %v1066
    %v1159 = vand.u32 2147483647, %v1066
    %vm1160 = vcmp.lt.f32.partialorder %v1159, 0.0004427343
    %v1161 = vsel %vm1160, %v1158, %v1155
    %v1162 = vadd.f32 %v1068, 1.0
    %v1163 = vlog2.pop %v1162
    %v1164 = vmul.f32 %v1163, 0.6931472
    %v1165 = vmul.f32 -0.5, %v1068
    %v1166 = vadd.f32 %v1165, 1.0
    %v1167 = vmul.f32 %v1166, %v1068
    %v1168 = vand.u32 2147483647, %v1068
    %vm1169 = vcmp.lt.f32.partialorder %v1168, 0.0004427343
    %v1170 = vsel %vm1169, %v1167, %v1164
    %v1171 = vadd.f32 %v1070, 1.0
    %v1172 = vlog2.pop %v1171
    %v1173 = vmul.f32 %v1172, 0.6931472
    %v1174 = vmul.f32 -0.5, %v1070
    %v1175 = vadd.f32 %v1174, 1.0
    %v1176 = vmul.f32 %v1175, %v1070
    %v1177 = vand.u32 2147483647, %v1070
    %vm1178 = vcmp.lt.f32.partialorder %v1177, 0.0004427343
    %v1179 = vsel %vm1178, %v1176, %v1173
    %v1180 = vadd.f32 %v1072, 1.0
    %v1181 = vlog2.pop %v1180
    %v1182 = vmul.f32 %v1181, 0.6931472
    %v1183 = vmul.f32 -0.5, %v1072
    %v1184 = vadd.f32 %v1183, 1.0
    %v1185 = vmul.f32 %v1184, %v1072
    %v1186 = vand.u32 2147483647, %v1072
    %vm1187 = vcmp.lt.f32.partialorder %v1186, 0.0004427343
    %v1188 = vsel %vm1187, %v1185, %v1182
    %v1189 = vadd.f32 %v1074, 1.0
    %v1190 = vlog2.pop %v1189
    %v1191 = vmul.f32 %v1190, 0.6931472
    %v1192 = vmul.f32 -0.5, %v1074
    %v1193 = vadd.f32 %v1192, 1.0
    %v1194 = vmul.f32 %v1193, %v1074
    %v1195 = vand.u32 2147483647, %v1074
    %vm1196 = vcmp.lt.f32.partialorder %v1195, 0.0004427343
    %v1197 = vsel %vm1196, %v1194, %v1191
    %v1198 = vadd.f32 %v1076, 1.0
    %v1199 = vlog2.pop %v1198
    %v1200 = vmul.f32 %v1199, 0.6931472
    %v1201 = vmul.f32 -0.5, %v1076
    %v1202 = vadd.f32 %v1201, 1.0
    %v1203 = vmul.f32 %v1202, %v1076
    %v1204 = vand.u32 2147483647, %v1076
    %vm1205 = vcmp.lt.f32.partialorder %v1204, 0.0004427343
    %v1206 = vsel %vm1205, %v1203, %v1200
    %v1207 = vadd.f32 %v1078, 1.0
    %v1208 = vlog2.pop %v1207
    %v1209 = vmul.f32 %v1208, 0.6931472
    %v1210 = vmul.f32 -0.5, %v1078
    %v1211 = vadd.f32 %v1210, 1.0
    %v1212 = vmul.f32 %v1211, %v1078
    %v1213 = vand.u32 2147483647, %v1078
    %vm1214 = vcmp.lt.f32.partialorder %v1213, 0.0004427343
    %v1215 = vsel %vm1214, %v1212, %v1209
    %v1216 = vadd.f32 %v1080, 1.0
    %v1217 = vlog2.pop %v1216
    %v1218 = vmul.f32 %v1217, 0.6931472
    %v1219 = vmul.f32 -0.5, %v1080
    %v1220 = vadd.f32 %v1219, 1.0
    %v1221 = vmul.f32 %v1220, %v1080
    %v1222 = vand.u32 2147483647, %v1080
    %vm1223 = vcmp.lt.f32.partialorder %v1222, 0.0004427343
    %v1224 = vsel %vm1223, %v1221, %v1218
    %v1225 = vmax.f32 %v1001, 0.0
    %v1226 = vmax.f32 %v1002, 0.0
    %v1227 = vmax.f32 %v1003, 0.0
    %v1228 = vmax.f32 %v1004, 0.0
    %v1229 = vmax.f32 %v1005, 0.0
    %v1230 = vmax.f32 %v1006, 0.0
    %v1231 = vmax.f32 %v1007, 0.0
    %v1232 = vmax.f32 %v1008, 0.0
    %v1233 = vmax.f32 %v1009, 0.0
    %v1234 = vmax.f32 %v1010, 0.0
    %v1235 = vmax.f32 %v1011, 0.0
    %v1236 = vmax.f32 %v1012, 0.0
    %v1237 = vmax.f32 %v1013, 0.0
    %v1238 = vmax.f32 %v1014, 0.0
    %v1239 = vmax.f32 %v1015, 0.0
    %v1240 = vmax.f32 %v1016, 0.0
    %v1241 = vadd.f32 %v1225, %v1089
    %v1242 = vadd.f32 %v1226, %v1098
    %v1243 = vadd.f32 %v1227, %v1107
    %v1244 = vadd.f32 %v1228, %v1116
    %v1245 = vadd.f32 %v1229, %v1125
    %v1246 = vadd.f32 %v1230, %v1134
    %v1247 = vadd.f32 %v1231, %v1143
    %v1248 = vadd.f32 %v1232, %v1152
    %v1249 = vadd.f32 %v1233, %v1161
    %v1250 = vadd.f32 %v1234, %v1170
    %v1251 = vadd.f32 %v1235, %v1179
    %v1252 = vadd.f32 %v1236, %v1188
    %v1253 = vadd.f32 %v1237, %v1197
    %v1254 = vadd.f32 %v1238, %v1206
    %v1255 = vadd.f32 %v1239, %v1215
    %v1256 = vadd.f32 %v1240, %v1224
    %v1257 = vsub.f32 %v1241, 0.6931472
    %v1258 = vsub.f32 %v1242, 0.6931472
    %v1259 = vsub.f32 %v1243, 0.6931472
    %v1260 = vsub.f32 %v1244, 0.6931472
    %v1261 = vsub.f32 %v1245, 0.6931472
    %v1262 = vsub.f32 %v1246, 0.6931472
    %v1263 = vsub.f32 %v1247, 0.6931472
    %v1264 = vsub.f32 %v1248, 0.6931472
    %v1265 = vsub.f32 %v1249, 0.6931472
    %v1266 = vsub.f32 %v1250, 0.6931472
    %v1267 = vsub.f32 %v1251, 0.6931472
    %v1268 = vsub.f32 %v1252, 0.6931472
    %v1269 = vsub.f32 %v1253, 0.6931472
    %v1270 = vsub.f32 %v1254, 0.6931472
    %v1271 = vsub.f32 %v1255, 0.6931472
    %v1272 = vsub.f32 %v1256, 0.6931472
    %v1273 = vpack.c.bf16 %v1261, %v1257
    %v1274 = vpack.c.bf16 %v1262, %v1258
    %v1275 = vpack.c.bf16 %v1263, %v1259
    %v1276 = vpack.c.bf16 %v1264, %v1260
    %v1277 = vpack.c.bf16 %v1269, %v1265
    %v1278 = vpack.c.bf16 %v1270, %v1266
    %v1279 = vpack.c.bf16 %v1271, %v1267
    %v1280 = vpack.c.bf16 %v1272, %v1268
    %s1281 = scalar_lea.vmem %s1, 16
    %v1282 = vld [vmem:[%s1281] sm:$0xf]
    %v1283 = vld [vmem:[%s1281 + $0x4] sm:$0xf]
    %v1284 = vld [vmem:[%s1281 + $0x8] sm:$0xf]
    %v1285 = vld [vmem:[%s1281 + $0xc] sm:$0xf]
    %s1286 = scalar_lea.vmem %s2, 32
    %v1287 = vld [vmem:[%s1286] sm:$0xff]
    %v1288 = vld [vmem:[%s1286 + $0x8] sm:$0xff]
    %v1289 = vld [vmem:[%s1286 + $0x10] sm:$0xff]
    %v1290 = vld [vmem:[%s1286 + $0x18] sm:$0xff]
    %1292 = vset.pattern.permute.xlu0 0
    %1293 = vperm.xlu0 %1292, %v1287
    %v1294 = vpop.permute.xlu0 %1293
    %1297 = vset.pattern.permute.xlu0 0
    %1298 = vperm.xlu0 %1297, %v1288
    %v1299 = vpop.permute.xlu0 %1298
    %1302 = vset.pattern.permute.xlu0 0
    %1303 = vperm.xlu0 %1302, %v1289
    %v1304 = vpop.permute.xlu0 %1303
    %1307 = vset.pattern.permute.xlu0 0
    %1308 = vperm.xlu0 %1307, %v1290
    %v1309 = vpop.permute.xlu0 %1308
    %v1315 = vunpack.c.l.b16 %v1282
    %v1316 = vunpack.c.l.b16 %v1283
    %v1317 = vunpack.c.l.b16 %v1284
    %v1318 = vunpack.c.l.b16 %v1285
    %v1319 = vpack.c.b16 %v1316, %v1315
    %v1320 = vpack.c.b16 %v1318, %v1317
    %v1322 = vsel %vm534, %v1319, 0
    %v1325 = vsel %vm534, %v1320, 0
    %1327 = vmatpush.bf16.msra.mxu0 0
    %1328 = vmatpush.bf16.msra.mxu0 0
    %1329 = vmatpush.bf16.msra.mxu0 0
    %1330 = vmatpush.bf16.msra.mxu0 0
    %1331 = vmatpush.bf16.msra.mxu0 0
    %1332 = vmatpush.bf16.msra.mxu0 0
    %1333 = vmatpush.bf16.msra.mxu0 %v1277
    %1334 = vmatpush.bf16.msra.mxu0 %v1273
    %1335 = vmatmul.bf16.gmra.mxu0 %v1322
    %v1336 = vpop.f32.mrf.mxu0
    %v1337 = vadd.f32 %v1294, %v1336
    %v1338 = vpop.f32.mrf.mxu0
    %v1339 = vadd.f32 %v1299, %v1338
    %1340 = vmatmul.bf16.gmra.mxu0 %v1325
    %v1341 = vpop.f32.mrf.mxu0
    %v1342 = vadd.f32 %v1304, %v1341
    %v1343 = vpop.f32.mrf.mxu0
    %v1344 = vadd.f32 %v1309, %v1343
    %1345 = vdwg.mxu0
    %1346 = vmatpush.bf16.msra.mxu0 0
    %1347 = vmatpush.bf16.msra.mxu0 0
    %1348 = vmatpush.bf16.msra.mxu0 0
    %1349 = vmatpush.bf16.msra.mxu0 0
    %1350 = vmatpush.bf16.msra.mxu0 0
    %1351 = vmatpush.bf16.msra.mxu0 0
    %1352 = vmatpush.bf16.msra.mxu0 %v1278
    %1353 = vmatpush.bf16.msra.mxu0 %v1274
    %1354 = vmatmul.bf16.gmra.mxu0 %v1322
    %v1355 = vpop.f32.mrf.mxu0
    %v1356 = vadd.f32 %v1294, %v1355
    %v1357 = vpop.f32.mrf.mxu0
    %v1358 = vadd.f32 %v1299, %v1357
    %1359 = vmatmul.bf16.gmra.mxu0 %v1325
    %v1360 = vpop.f32.mrf.mxu0
    %v1361 = vadd.f32 %v1304, %v1360
    %v1362 = vpop.f32.mrf.mxu0
    %v1363 = vadd.f32 %v1309, %v1362
    %1364 = vdwg.mxu0
    %1365 = vmatpush.bf16.msra.mxu0 0
    %1366 = vmatpush.bf16.msra.mxu0 0
    %1367 = vmatpush.bf16.msra.mxu0 0
    %1368 = vmatpush.bf16.msra.mxu0 0
    %1369 = vmatpush.bf16.msra.mxu0 0
    %1370 = vmatpush.bf16.msra.mxu0 0
    %1371 = vmatpush.bf16.msra.mxu0 %v1279
    %1372 = vmatpush.bf16.msra.mxu0 %v1275
    %1373 = vmatmul.bf16.gmra.mxu0 %v1322
    %v1374 = vpop.f32.mrf.mxu0
    %v1375 = vadd.f32 %v1294, %v1374
    %v1376 = vpop.f32.mrf.mxu0
    %v1377 = vadd.f32 %v1299, %v1376
    %1378 = vmatmul.bf16.gmra.mxu0 %v1325
    %v1379 = vpop.f32.mrf.mxu0
    %v1380 = vadd.f32 %v1304, %v1379
    %v1381 = vpop.f32.mrf.mxu0
    %v1382 = vadd.f32 %v1309, %v1381
    %1383 = vdwg.mxu0
    %1384 = vmatpush.bf16.msra.mxu0 0
    %1385 = vmatpush.bf16.msra.mxu0 0
    %1386 = vmatpush.bf16.msra.mxu0 0
    %1387 = vmatpush.bf16.msra.mxu0 0
    %1388 = vmatpush.bf16.msra.mxu0 0
    %1389 = vmatpush.bf16.msra.mxu0 0
    %1390 = vmatpush.bf16.msra.mxu0 %v1280
    %1391 = vmatpush.bf16.msra.mxu0 %v1276
    %1392 = vmatmul.bf16.gmra.mxu0 %v1322
    %v1393 = vpop.f32.mrf.mxu0
    %v1394 = vadd.f32 %v1294, %v1393
    %v1395 = vpop.f32.mrf.mxu0
    %v1396 = vadd.f32 %v1299, %v1395
    %1397 = vmatmul.bf16.gmra.mxu0 %v1325
    %v1398 = vpop.f32.mrf.mxu0
    %v1399 = vadd.f32 %v1304, %v1398
    %v1400 = vpop.f32.mrf.mxu0
    %v1401 = vadd.f32 %v1309, %v1400
    %1402 = vdwg.mxu0
    %v1403 = vand.u32 2147483647, %v1337
    %v1404 = vand.u32 2147483647, %v1356
    %v1405 = vand.u32 2147483647, %v1375
    %v1406 = vand.u32 2147483647, %v1394
    %v1407 = vand.u32 2147483647, %v1339
    %v1408 = vand.u32 2147483647, %v1358
    %v1409 = vand.u32 2147483647, %v1377
    %v1410 = vand.u32 2147483647, %v1396
    %v1411 = vand.u32 2147483647, %v1342
    %v1412 = vand.u32 2147483647, %v1361
    %v1413 = vand.u32 2147483647, %v1380
    %v1414 = vand.u32 2147483647, %v1399
    %v1415 = vand.u32 2147483647, %v1344
    %v1416 = vand.u32 2147483647, %v1363
    %v1417 = vand.u32 2147483647, %v1382
    %v1418 = vand.u32 2147483647, %v1401
    %v1419 = vsub.f32 0.0, %v1403
    %v1420 = vsub.f32 0.0, %v1404
    %v1421 = vsub.f32 0.0, %v1405
    %v1422 = vsub.f32 0.0, %v1406
    %v1423 = vsub.f32 0.0, %v1407
    %v1424 = vsub.f32 0.0, %v1408
    %v1425 = vsub.f32 0.0, %v1409
    %v1426 = vsub.f32 0.0, %v1410
    %v1427 = vsub.f32 0.0, %v1411
    %v1428 = vsub.f32 0.0, %v1412
    %v1429 = vsub.f32 0.0, %v1413
    %v1430 = vsub.f32 0.0, %v1414
    %v1431 = vsub.f32 0.0, %v1415
    %v1432 = vsub.f32 0.0, %v1416
    %v1433 = vsub.f32 0.0, %v1417
    %v1434 = vsub.f32 0.0, %v1418
    %v1435 = vmul.f32 %v1419, 1.442695
    %v1436 = vpow.pop %v1435
    %v1437 = vmul.f32 %v1420, 1.442695
    %v1438 = vpow.pop %v1437
    %v1439 = vmul.f32 %v1421, 1.442695
    %v1440 = vpow.pop %v1439
    %v1441 = vmul.f32 %v1422, 1.442695
    %v1442 = vpow.pop %v1441
    %v1443 = vmul.f32 %v1423, 1.442695
    %v1444 = vpow.pop %v1443
    %v1445 = vmul.f32 %v1424, 1.442695
    %v1446 = vpow.pop %v1445
    %v1447 = vmul.f32 %v1425, 1.442695
    %v1448 = vpow.pop %v1447
    %v1449 = vmul.f32 %v1426, 1.442695
    %v1450 = vpow.pop %v1449
    %v1451 = vmul.f32 %v1427, 1.442695
    %v1452 = vpow.pop %v1451
    %v1453 = vmul.f32 %v1428, 1.442695
    %v1454 = vpow.pop %v1453
    %v1455 = vmul.f32 %v1429, 1.442695
    %v1456 = vpow.pop %v1455
    %v1457 = vmul.f32 %v1430, 1.442695
    %v1458 = vpow.pop %v1457
    %v1459 = vmul.f32 %v1431, 1.442695
    %v1460 = vpow.pop %v1459
    %v1461 = vmul.f32 %v1432, 1.442695
    %v1462 = vpow.pop %v1461
    %v1463 = vmul.f32 %v1433, 1.442695
    %v1464 = vpow.pop %v1463
    %v1465 = vmul.f32 %v1434, 1.442695
    %v1466 = vpow.pop %v1465
    %v1467 = vadd.f32 %v1436, 1.0
    %v1468 = vlog2.pop %v1467
    %v1469 = vmul.f32 %v1468, 0.6931472
    %v1470 = vmul.f32 -0.5, %v1436
    %v1471 = vadd.f32 %v1470, 1.0
    %v1472 = vmul.f32 %v1471, %v1436
    %v1473 = vand.u32 2147483647, %v1436
    %vm1474 = vcmp.lt.f32.partialorder %v1473, 0.0004427343
    %v1475 = vsel %vm1474, %v1472, %v1469
    %v1476 = vadd.f32 %v1438, 1.0
    %v1477 = vlog2.pop %v1476
    %v1478 = vmul.f32 %v1477, 0.6931472
    %v1479 = vmul.f32 -0.5, %v1438
    %v1480 = vadd.f32 %v1479, 1.0
    %v1481 = vmul.f32 %v1480, %v1438
    %v1482 = vand.u32 2147483647, %v1438
    %vm1483 = vcmp.lt.f32.partialorder %v1482, 0.0004427343
    %v1484 = vsel %vm1483, %v1481, %v1478
    %v1485 = vadd.f32 %v1440, 1.0
    %v1486 = vlog2.pop %v1485
    %v1487 = vmul.f32 %v1486, 0.6931472
    %v1488 = vmul.f32 -0.5, %v1440
    %v1489 = vadd.f32 %v1488, 1.0
    %v1490 = vmul.f32 %v1489, %v1440
    %v1491 = vand.u32 2147483647, %v1440
    %vm1492 = vcmp.lt.f32.partialorder %v1491, 0.0004427343
    %v1493 = vsel %vm1492, %v1490, %v1487
    %v1494 = vadd.f32 %v1442, 1.0
    %v1495 = vlog2.pop %v1494
    %v1496 = vmul.f32 %v1495, 0.6931472
    %v1497 = vmul.f32 -0.5, %v1442
    %v1498 = vadd.f32 %v1497, 1.0
    %v1499 = vmul.f32 %v1498, %v1442
    %v1500 = vand.u32 2147483647, %v1442
    %vm1501 = vcmp.lt.f32.partialorder %v1500, 0.0004427343
    %v1502 = vsel %vm1501, %v1499, %v1496
    %v1503 = vadd.f32 %v1444, 1.0
    %v1504 = vlog2.pop %v1503
    %v1505 = vmul.f32 %v1504, 0.6931472
    %v1506 = vmul.f32 -0.5, %v1444
    %v1507 = vadd.f32 %v1506, 1.0
    %v1508 = vmul.f32 %v1507, %v1444
    %v1509 = vand.u32 2147483647, %v1444
    %vm1510 = vcmp.lt.f32.partialorder %v1509, 0.0004427343
    %v1511 = vsel %vm1510, %v1508, %v1505
    %v1512 = vadd.f32 %v1446, 1.0
    %v1513 = vlog2.pop %v1512
    %v1514 = vmul.f32 %v1513, 0.6931472
    %v1515 = vmul.f32 -0.5, %v1446
    %v1516 = vadd.f32 %v1515, 1.0
    %v1517 = vmul.f32 %v1516, %v1446
    %v1518 = vand.u32 2147483647, %v1446
    %vm1519 = vcmp.lt.f32.partialorder %v1518, 0.0004427343
    %v1520 = vsel %vm1519, %v1517, %v1514
    %v1521 = vadd.f32 %v1448, 1.0
    %v1522 = vlog2.pop %v1521
    %v1523 = vmul.f32 %v1522, 0.6931472
    %v1524 = vmul.f32 -0.5, %v1448
    %v1525 = vadd.f32 %v1524, 1.0
    %v1526 = vmul.f32 %v1525, %v1448
    %v1527 = vand.u32 2147483647, %v1448
    %vm1528 = vcmp.lt.f32.partialorder %v1527, 0.0004427343
    %v1529 = vsel %vm1528, %v1526, %v1523
    %v1530 = vadd.f32 %v1450, 1.0
    %v1531 = vlog2.pop %v1530
    %v1532 = vmul.f32 %v1531, 0.6931472
    %v1533 = vmul.f32 -0.5, %v1450
    %v1534 = vadd.f32 %v1533, 1.0
    %v1535 = vmul.f32 %v1534, %v1450
    %v1536 = vand.u32 2147483647, %v1450
    %vm1537 = vcmp.lt.f32.partialorder %v1536, 0.0004427343
    %v1538 = vsel %vm1537, %v1535, %v1532
    %v1539 = vadd.f32 %v1452, 1.0
    %v1540 = vlog2.pop %v1539
    %v1541 = vmul.f32 %v1540, 0.6931472
    %v1542 = vmul.f32 -0.5, %v1452
    %v1543 = vadd.f32 %v1542, 1.0
    %v1544 = vmul.f32 %v1543, %v1452
    %v1545 = vand.u32 2147483647, %v1452
    %vm1546 = vcmp.lt.f32.partialorder %v1545, 0.0004427343
    %v1547 = vsel %vm1546, %v1544, %v1541
    %v1548 = vadd.f32 %v1454, 1.0
    %v1549 = vlog2.pop %v1548
    %v1550 = vmul.f32 %v1549, 0.6931472
    %v1551 = vmul.f32 -0.5, %v1454
    %v1552 = vadd.f32 %v1551, 1.0
    %v1553 = vmul.f32 %v1552, %v1454
    %v1554 = vand.u32 2147483647, %v1454
    %vm1555 = vcmp.lt.f32.partialorder %v1554, 0.0004427343
    %v1556 = vsel %vm1555, %v1553, %v1550
    %v1557 = vadd.f32 %v1456, 1.0
    %v1558 = vlog2.pop %v1557
    %v1559 = vmul.f32 %v1558, 0.6931472
    %v1560 = vmul.f32 -0.5, %v1456
    %v1561 = vadd.f32 %v1560, 1.0
    %v1562 = vmul.f32 %v1561, %v1456
    %v1563 = vand.u32 2147483647, %v1456
    %vm1564 = vcmp.lt.f32.partialorder %v1563, 0.0004427343
    %v1565 = vsel %vm1564, %v1562, %v1559
    %v1566 = vadd.f32 %v1458, 1.0
    %v1567 = vlog2.pop %v1566
    %v1568 = vmul.f32 %v1567, 0.6931472
    %v1569 = vmul.f32 -0.5, %v1458
    %v1570 = vadd.f32 %v1569, 1.0
    %v1571 = vmul.f32 %v1570, %v1458
    %v1572 = vand.u32 2147483647, %v1458
    %vm1573 = vcmp.lt.f32.partialorder %v1572, 0.0004427343
    %v1574 = vsel %vm1573, %v1571, %v1568
    %v1575 = vadd.f32 %v1460, 1.0
    %v1576 = vlog2.pop %v1575
    %v1577 = vmul.f32 %v1576, 0.6931472
    %v1578 = vmul.f32 -0.5, %v1460
    %v1579 = vadd.f32 %v1578, 1.0
    %v1580 = vmul.f32 %v1579, %v1460
    %v1581 = vand.u32 2147483647, %v1460
    %vm1582 = vcmp.lt.f32.partialorder %v1581, 0.0004427343
    %v1583 = vsel %vm1582, %v1580, %v1577
    %v1584 = vadd.f32 %v1462, 1.0
    %v1585 = vlog2.pop %v1584
    %v1586 = vmul.f32 %v1585, 0.6931472
    %v1587 = vmul.f32 -0.5, %v1462
    %v1588 = vadd.f32 %v1587, 1.0
    %v1589 = vmul.f32 %v1588, %v1462
    %v1590 = vand.u32 2147483647, %v1462
    %vm1591 = vcmp.lt.f32.partialorder %v1590, 0.0004427343
    %v1592 = vsel %vm1591, %v1589, %v1586
    %v1593 = vadd.f32 %v1464, 1.0
    %v1594 = vlog2.pop %v1593
    %v1595 = vmul.f32 %v1594, 0.6931472
    %v1596 = vmul.f32 -0.5, %v1464
    %v1597 = vadd.f32 %v1596, 1.0
    %v1598 = vmul.f32 %v1597, %v1464
    %v1599 = vand.u32 2147483647, %v1464
    %vm1600 = vcmp.lt.f32.partialorder %v1599, 0.0004427343
    %v1601 = vsel %vm1600, %v1598, %v1595
    %v1602 = vadd.f32 %v1466, 1.0
    %v1603 = vlog2.pop %v1602
    %v1604 = vmul.f32 %v1603, 0.6931472
    %v1605 = vmul.f32 -0.5, %v1466
    %v1606 = vadd.f32 %v1605, 1.0
    %v1607 = vmul.f32 %v1606, %v1466
    %v1608 = vand.u32 2147483647, %v1466
    %vm1609 = vcmp.lt.f32.partialorder %v1608, 0.0004427343
    %v1610 = vsel %vm1609, %v1607, %v1604
    %v1611 = vmax.f32 %v1337, 0.0
    %v1612 = vmax.f32 %v1356, 0.0
    %v1613 = vmax.f32 %v1375, 0.0
    %v1614 = vmax.f32 %v1394, 0.0
    %v1615 = vmax.f32 %v1339, 0.0
    %v1616 = vmax.f32 %v1358, 0.0
    %v1617 = vmax.f32 %v1377, 0.0
    %v1618 = vmax.f32 %v1396, 0.0
    %v1619 = vmax.f32 %v1342, 0.0
    %v1620 = vmax.f32 %v1361, 0.0
    %v1621 = vmax.f32 %v1380, 0.0
    %v1622 = vmax.f32 %v1399, 0.0
    %v1623 = vmax.f32 %v1344, 0.0
    %v1624 = vmax.f32 %v1363, 0.0
    %v1625 = vmax.f32 %v1382, 0.0
    %v1626 = vmax.f32 %v1401, 0.0
    %v1627 = vadd.f32 %v1611, %v1475
    %v1628 = vadd.f32 %v1612, %v1484
    %v1629 = vadd.f32 %v1613, %v1493
    %v1630 = vadd.f32 %v1614, %v1502
    %v1631 = vadd.f32 %v1615, %v1511
    %v1632 = vadd.f32 %v1616, %v1520
    %v1633 = vadd.f32 %v1617, %v1529
    %v1634 = vadd.f32 %v1618, %v1538
    %v1635 = vadd.f32 %v1619, %v1547
    %v1636 = vadd.f32 %v1620, %v1556
    %v1637 = vadd.f32 %v1621, %v1565
    %v1638 = vadd.f32 %v1622, %v1574
    %v1639 = vadd.f32 %v1623, %v1583
    %v1640 = vadd.f32 %v1624, %v1592
    %v1641 = vadd.f32 %v1625, %v1601
    %v1642 = vadd.f32 %v1626, %v1610
    %v1643 = vsub.f32 %v1627, 0.6931472
    %v1644 = vsub.f32 %v1628, 0.6931472
    %v1645 = vsub.f32 %v1629, 0.6931472
    %v1646 = vsub.f32 %v1630, 0.6931472
    %v1647 = vsub.f32 %v1631, 0.6931472
    %v1648 = vsub.f32 %v1632, 0.6931472
    %v1649 = vsub.f32 %v1633, 0.6931472
    %v1650 = vsub.f32 %v1634, 0.6931472
    %v1651 = vsub.f32 %v1635, 0.6931472
    %v1652 = vsub.f32 %v1636, 0.6931472
    %v1653 = vsub.f32 %v1637, 0.6931472
    %v1654 = vsub.f32 %v1638, 0.6931472
    %v1655 = vsub.f32 %v1639, 0.6931472
    %v1656 = vsub.f32 %v1640, 0.6931472
    %v1657 = vsub.f32 %v1641, 0.6931472
    %v1658 = vsub.f32 %v1642, 0.6931472
    %v1659 = vpack.c.bf16 %v1647, %v1643
    %v1660 = vpack.c.bf16 %v1648, %v1644
    %v1661 = vpack.c.bf16 %v1649, %v1645
    %v1662 = vpack.c.bf16 %v1650, %v1646
    %v1663 = vpack.c.bf16 %v1655, %v1651
    %v1664 = vpack.c.bf16 %v1656, %v1652
    %v1665 = vpack.c.bf16 %v1657, %v1653
    %v1666 = vpack.c.bf16 %v1658, %v1654
    %s1667 = scalar_lea.vmem %s3, 16
    %v1668 = vld [vmem:[%s1667] sm:$0xf]
    %v1669 = vld [vmem:[%s1667 + $0x4] sm:$0xf]
    %v1670 = vld [vmem:[%s1667 + $0x8] sm:$0xf]
    %v1671 = vld [vmem:[%s1667 + $0xc] sm:$0xf]
    %s1672 = scalar_lea.vmem %s4, 32
    %v1673 = vld [vmem:[%s1672] sm:$0xff]
    %v1674 = vld [vmem:[%s1672 + $0x8] sm:$0xff]
    %v1675 = vld [vmem:[%s1672 + $0x10] sm:$0xff]
    %v1676 = vld [vmem:[%s1672 + $0x18] sm:$0xff]
    %1678 = vset.pattern.permute.xlu0 0
    %1679 = vperm.xlu0 %1678, %v1673
    %v1680 = vpop.permute.xlu0 %1679
    %1683 = vset.pattern.permute.xlu0 0
    %1684 = vperm.xlu0 %1683, %v1674
    %v1685 = vpop.permute.xlu0 %1684
    %1688 = vset.pattern.permute.xlu0 0
    %1689 = vperm.xlu0 %1688, %v1675
    %v1690 = vpop.permute.xlu0 %1689
    %1693 = vset.pattern.permute.xlu0 0
    %1694 = vperm.xlu0 %1693, %v1676
    %v1695 = vpop.permute.xlu0 %1694
    %v1701 = vunpack.c.l.b16 %v1668
    %v1702 = vunpack.c.l.b16 %v1669
    %v1703 = vunpack.c.l.b16 %v1670
    %v1704 = vunpack.c.l.b16 %v1671
    %v1705 = vpack.c.b16 %v1702, %v1701
    %v1706 = vpack.c.b16 %v1704, %v1703
    %v1708 = vsel %vm534, %v1705, 0
    %v1711 = vsel %vm534, %v1706, 0
    %1713 = vmatpush.bf16.msra.mxu0 0
    %1714 = vmatpush.bf16.msra.mxu0 0
    %1715 = vmatpush.bf16.msra.mxu0 0
    %1716 = vmatpush.bf16.msra.mxu0 0
    %1717 = vmatpush.bf16.msra.mxu0 0
    %1718 = vmatpush.bf16.msra.mxu0 0
    %1719 = vmatpush.bf16.msra.mxu0 %v1663
    %1720 = vmatpush.bf16.msra.mxu0 %v1659
    %1721 = vmatmul.bf16.gmra.mxu0 %v1708
    %v1722 = vpop.f32.mrf.mxu0
    %v1723 = vadd.f32 %v1680, %v1722
    %v1724 = vpop.f32.mrf.mxu0
    %v1725 = vadd.f32 %v1685, %v1724
    %1726 = vmatmul.bf16.gmra.mxu0 %v1711
    %v1727 = vpop.f32.mrf.mxu0
    %v1728 = vadd.f32 %v1690, %v1727
    %v1729 = vpop.f32.mrf.mxu0
    %v1730 = vadd.f32 %v1695, %v1729
    %1731 = vdwg.mxu0
    %1732 = vmatpush.bf16.msra.mxu0 0
    %1733 = vmatpush.bf16.msra.mxu0 0
    %1734 = vmatpush.bf16.msra.mxu0 0
    %1735 = vmatpush.bf16.msra.mxu0 0
    %1736 = vmatpush.bf16.msra.mxu0 0
    %1737 = vmatpush.bf16.msra.mxu0 0
    %1738 = vmatpush.bf16.msra.mxu0 %v1664
    %1739 = vmatpush.bf16.msra.mxu0 %v1660
    %1740 = vmatmul.bf16.gmra.mxu0 %v1708
    %v1741 = vpop.f32.mrf.mxu0
    %v1742 = vadd.f32 %v1680, %v1741
    %v1743 = vpop.f32.mrf.mxu0
    %v1744 = vadd.f32 %v1685, %v1743
    %1745 = vmatmul.bf16.gmra.mxu0 %v1711
    %v1746 = vpop.f32.mrf.mxu0
    %v1747 = vadd.f32 %v1690, %v1746
    %v1748 = vpop.f32.mrf.mxu0
    %v1749 = vadd.f32 %v1695, %v1748
    %1750 = vdwg.mxu0
    %1751 = vmatpush.bf16.msra.mxu0 0
    %1752 = vmatpush.bf16.msra.mxu0 0
    %1753 = vmatpush.bf16.msra.mxu0 0
    %1754 = vmatpush.bf16.msra.mxu0 0
    %1755 = vmatpush.bf16.msra.mxu0 0
    %1756 = vmatpush.bf16.msra.mxu0 0
    %1757 = vmatpush.bf16.msra.mxu0 %v1665
    %1758 = vmatpush.bf16.msra.mxu0 %v1661
    %1759 = vmatmul.bf16.gmra.mxu0 %v1708
    %v1760 = vpop.f32.mrf.mxu0
    %v1761 = vadd.f32 %v1680, %v1760
    %v1762 = vpop.f32.mrf.mxu0
    %v1763 = vadd.f32 %v1685, %v1762
    %1764 = vmatmul.bf16.gmra.mxu0 %v1711
    %v1765 = vpop.f32.mrf.mxu0
    %v1766 = vadd.f32 %v1690, %v1765
    %v1767 = vpop.f32.mrf.mxu0
    %v1768 = vadd.f32 %v1695, %v1767
    %1769 = vdwg.mxu0
    %1770 = vmatpush.bf16.msra.mxu0 0
    %1771 = vmatpush.bf16.msra.mxu0 0
    %1772 = vmatpush.bf16.msra.mxu0 0
    %1773 = vmatpush.bf16.msra.mxu0 0
    %1774 = vmatpush.bf16.msra.mxu0 0
    %1775 = vmatpush.bf16.msra.mxu0 0
    %1776 = vmatpush.bf16.msra.mxu0 %v1666
    %1777 = vmatpush.bf16.msra.mxu0 %v1662
    %1778 = vmatmul.bf16.gmra.mxu0 %v1708
    %v1779 = vpop.f32.mrf.mxu0
    %v1780 = vadd.f32 %v1680, %v1779
    %v1781 = vpop.f32.mrf.mxu0
    %v1782 = vadd.f32 %v1685, %v1781
    %1783 = vmatmul.bf16.gmra.mxu0 %v1711
    %v1784 = vpop.f32.mrf.mxu0
    %v1785 = vadd.f32 %v1690, %v1784
    %v1786 = vpop.f32.mrf.mxu0
    %v1787 = vadd.f32 %v1695, %v1786
    %1788 = vdwg.mxu0
    %v1789 = vadd.f32 %v1001, %v1723
    %v1790 = vadd.f32 %v1002, %v1742
    %v1791 = vadd.f32 %v1003, %v1761
    %v1792 = vadd.f32 %v1004, %v1780
    %v1793 = vadd.f32 %v1005, %v1725
    %v1794 = vadd.f32 %v1006, %v1744
    %v1795 = vadd.f32 %v1007, %v1763
    %v1796 = vadd.f32 %v1008, %v1782
    %v1797 = vadd.f32 %v1009, %v1728
    %v1798 = vadd.f32 %v1010, %v1747
    %v1799 = vadd.f32 %v1011, %v1766
    %v1800 = vadd.f32 %v1012, %v1785
    %v1801 = vadd.f32 %v1013, %v1730
    %v1802 = vadd.f32 %v1014, %v1749
    %v1803 = vadd.f32 %v1015, %v1768
    %v1804 = vadd.f32 %v1016, %v1787
    %v1805 = vand.u32 2147483647, %v1789
    %v1806 = vand.u32 2147483647, %v1790
    %v1807 = vand.u32 2147483647, %v1791
    %v1808 = vand.u32 2147483647, %v1792
    %v1809 = vand.u32 2147483647, %v1793
    %v1810 = vand.u32 2147483647, %v1794
    %v1811 = vand.u32 2147483647, %v1795
    %v1812 = vand.u32 2147483647, %v1796
    %v1813 = vand.u32 2147483647, %v1797
    %v1814 = vand.u32 2147483647, %v1798
    %v1815 = vand.u32 2147483647, %v1799
    %v1816 = vand.u32 2147483647, %v1800
    %v1817 = vand.u32 2147483647, %v1801
    %v1818 = vand.u32 2147483647, %v1802
    %v1819 = vand.u32 2147483647, %v1803
    %v1820 = vand.u32 2147483647, %v1804
    %v1821 = vsub.f32 0.0, %v1805
    %v1822 = vsub.f32 0.0, %v1806
    %v1823 = vsub.f32 0.0, %v1807
    %v1824 = vsub.f32 0.0, %v1808
    %v1825 = vsub.f32 0.0, %v1809
    %v1826 = vsub.f32 0.0, %v1810
    %v1827 = vsub.f32 0.0, %v1811
    %v1828 = vsub.f32 0.0, %v1812
    %v1829 = vsub.f32 0.0, %v1813
    %v1830 = vsub.f32 0.0, %v1814
    %v1831 = vsub.f32 0.0, %v1815
    %v1832 = vsub.f32 0.0, %v1816
    %v1833 = vsub.f32 0.0, %v1817
    %v1834 = vsub.f32 0.0, %v1818
    %v1835 = vsub.f32 0.0, %v1819
    %v1836 = vsub.f32 0.0, %v1820
    %v1837 = vmul.f32 %v1821, 1.442695
    %v1838 = vpow.pop %v1837
    %v1839 = vmul.f32 %v1822, 1.442695
    %v1840 = vpow.pop %v1839
    %v1841 = vmul.f32 %v1823, 1.442695
    %v1842 = vpow.pop %v1841
    %v1843 = vmul.f32 %v1824, 1.442695
    %v1844 = vpow.pop %v1843
    %v1845 = vmul.f32 %v1825, 1.442695
    %v1846 = vpow.pop %v1845
    %v1847 = vmul.f32 %v1826, 1.442695
    %v1848 = vpow.pop %v1847
    %v1849 = vmul.f32 %v1827, 1.442695
    %v1850 = vpow.pop %v1849
    %v1851 = vmul.f32 %v1828, 1.442695
    %v1852 = vpow.pop %v1851
    %v1853 = vmul.f32 %v1829, 1.442695
    %v1854 = vpow.pop %v1853
    %v1855 = vmul.f32 %v1830, 1.442695
    %v1856 = vpow.pop %v1855
    %v1857 = vmul.f32 %v1831, 1.442695
    %v1858 = vpow.pop %v1857
    %v1859 = vmul.f32 %v1832, 1.442695
    %v1860 = vpow.pop %v1859
    %v1861 = vmul.f32 %v1833, 1.442695
    %v1862 = vpow.pop %v1861
    %v1863 = vmul.f32 %v1834, 1.442695
    %v1864 = vpow.pop %v1863
    %v1865 = vmul.f32 %v1835, 1.442695
    %v1866 = vpow.pop %v1865
    %v1867 = vmul.f32 %v1836, 1.442695
    %v1868 = vpow.pop %v1867
    %v1869 = vadd.f32 %v1838, 1.0
    %v1870 = vlog2.pop %v1869
    %v1871 = vmul.f32 %v1870, 0.6931472
    %v1872 = vmul.f32 -0.5, %v1838
    %v1873 = vadd.f32 %v1872, 1.0
    %v1874 = vmul.f32 %v1873, %v1838
    %v1875 = vand.u32 2147483647, %v1838
    %vm1876 = vcmp.lt.f32.partialorder %v1875, 0.0004427343
    %v1877 = vsel %vm1876, %v1874, %v1871
    %v1878 = vadd.f32 %v1840, 1.0
    %v1879 = vlog2.pop %v1878
    %v1880 = vmul.f32 %v1879, 0.6931472
    %v1881 = vmul.f32 -0.5, %v1840
    %v1882 = vadd.f32 %v1881, 1.0
    %v1883 = vmul.f32 %v1882, %v1840
    %v1884 = vand.u32 2147483647, %v1840
    %vm1885 = vcmp.lt.f32.partialorder %v1884, 0.0004427343
    %v1886 = vsel %vm1885, %v1883, %v1880
    %v1887 = vadd.f32 %v1842, 1.0
    %v1888 = vlog2.pop %v1887
    %v1889 = vmul.f32 %v1888, 0.6931472
    %v1890 = vmul.f32 -0.5, %v1842
    %v1891 = vadd.f32 %v1890, 1.0
    %v1892 = vmul.f32 %v1891, %v1842
    %v1893 = vand.u32 2147483647, %v1842
    %vm1894 = vcmp.lt.f32.partialorder %v1893, 0.0004427343
    %v1895 = vsel %vm1894, %v1892, %v1889
    %v1896 = vadd.f32 %v1844, 1.0
    %v1897 = vlog2.pop %v1896
    %v1898 = vmul.f32 %v1897, 0.6931472
    %v1899 = vmul.f32 -0.5, %v1844
    %v1900 = vadd.f32 %v1899, 1.0
    %v1901 = vmul.f32 %v1900, %v1844
    %v1902 = vand.u32 2147483647, %v1844
    %vm1903 = vcmp.lt.f32.partialorder %v1902, 0.0004427343
    %v1904 = vsel %vm1903, %v1901, %v1898
    %v1905 = vadd.f32 %v1846, 1.0
    %v1906 = vlog2.pop %v1905
    %v1907 = vmul.f32 %v1906, 0.6931472
    %v1908 = vmul.f32 -0.5, %v1846
    %v1909 = vadd.f32 %v1908, 1.0
    %v1910 = vmul.f32 %v1909, %v1846
    %v1911 = vand.u32 2147483647, %v1846
    %vm1912 = vcmp.lt.f32.partialorder %v1911, 0.0004427343
    %v1913 = vsel %vm1912, %v1910, %v1907
    %v1914 = vadd.f32 %v1848, 1.0
    %v1915 = vlog2.pop %v1914
    %v1916 = vmul.f32 %v1915, 0.6931472
    %v1917 = vmul.f32 -0.5, %v1848
    %v1918 = vadd.f32 %v1917, 1.0
    %v1919 = vmul.f32 %v1918, %v1848
    %v1920 = vand.u32 2147483647, %v1848
    %vm1921 = vcmp.lt.f32.partialorder %v1920, 0.0004427343
    %v1922 = vsel %vm1921, %v1919, %v1916
    %v1923 = vadd.f32 %v1850, 1.0
    %v1924 = vlog2.pop %v1923
    %v1925 = vmul.f32 %v1924, 0.6931472
    %v1926 = vmul.f32 -0.5, %v1850
    %v1927 = vadd.f32 %v1926, 1.0
    %v1928 = vmul.f32 %v1927, %v1850
    %v1929 = vand.u32 2147483647, %v1850
    %vm1930 = vcmp.lt.f32.partialorder %v1929, 0.0004427343
    %v1931 = vsel %vm1930, %v1928, %v1925
    %v1932 = vadd.f32 %v1852, 1.0
    %v1933 = vlog2.pop %v1932
    %v1934 = vmul.f32 %v1933, 0.6931472
    %v1935 = vmul.f32 -0.5, %v1852
    %v1936 = vadd.f32 %v1935, 1.0
    %v1937 = vmul.f32 %v1936, %v1852
    %v1938 = vand.u32 2147483647, %v1852
    %vm1939 = vcmp.lt.f32.partialorder %v1938, 0.0004427343
    %v1940 = vsel %vm1939, %v1937, %v1934
    %v1941 = vadd.f32 %v1854, 1.0
    %v1942 = vlog2.pop %v1941
    %v1943 = vmul.f32 %v1942, 0.6931472
    %v1944 = vmul.f32 -0.5, %v1854
    %v1945 = vadd.f32 %v1944, 1.0
    %v1946 = vmul.f32 %v1945, %v1854
    %v1947 = vand.u32 2147483647, %v1854
    %vm1948 = vcmp.lt.f32.partialorder %v1947, 0.0004427343
    %v1949 = vsel %vm1948, %v1946, %v1943
    %v1950 = vadd.f32 %v1856, 1.0
    %v1951 = vlog2.pop %v1950
    %v1952 = vmul.f32 %v1951, 0.6931472
    %v1953 = vmul.f32 -0.5, %v1856
    %v1954 = vadd.f32 %v1953, 1.0
    %v1955 = vmul.f32 %v1954, %v1856
    %v1956 = vand.u32 2147483647, %v1856
    %vm1957 = vcmp.lt.f32.partialorder %v1956, 0.0004427343
    %v1958 = vsel %vm1957, %v1955, %v1952
    %v1959 = vadd.f32 %v1858, 1.0
    %v1960 = vlog2.pop %v1959
    %v1961 = vmul.f32 %v1960, 0.6931472
    %v1962 = vmul.f32 -0.5, %v1858
    %v1963 = vadd.f32 %v1962, 1.0
    %v1964 = vmul.f32 %v1963, %v1858
    %v1965 = vand.u32 2147483647, %v1858
    %vm1966 = vcmp.lt.f32.partialorder %v1965, 0.0004427343
    %v1967 = vsel %vm1966, %v1964, %v1961
    %v1968 = vadd.f32 %v1860, 1.0
    %v1969 = vlog2.pop %v1968
    %v1970 = vmul.f32 %v1969, 0.6931472
    %v1971 = vmul.f32 -0.5, %v1860
    %v1972 = vadd.f32 %v1971, 1.0
    %v1973 = vmul.f32 %v1972, %v1860
    %v1974 = vand.u32 2147483647, %v1860
    %vm1975 = vcmp.lt.f32.partialorder %v1974, 0.0004427343
    %v1976 = vsel %vm1975, %v1973, %v1970
    %v1977 = vadd.f32 %v1862, 1.0
    %v1978 = vlog2.pop %v1977
    %v1979 = vmul.f32 %v1978, 0.6931472
    %v1980 = vmul.f32 -0.5, %v1862
    %v1981 = vadd.f32 %v1980, 1.0
    %v1982 = vmul.f32 %v1981, %v1862
    %v1983 = vand.u32 2147483647, %v1862
    %vm1984 = vcmp.lt.f32.partialorder %v1983, 0.0004427343
    %v1985 = vsel %vm1984, %v1982, %v1979
    %v1986 = vadd.f32 %v1864, 1.0
    %v1987 = vlog2.pop %v1986
    %v1988 = vmul.f32 %v1987, 0.6931472
    %v1989 = vmul.f32 -0.5, %v1864
    %v1990 = vadd.f32 %v1989, 1.0
    %v1991 = vmul.f32 %v1990, %v1864
    %v1992 = vand.u32 2147483647, %v1864
    %vm1993 = vcmp.lt.f32.partialorder %v1992, 0.0004427343
    %v1994 = vsel %vm1993, %v1991, %v1988
    %v1995 = vadd.f32 %v1866, 1.0
    %v1996 = vlog2.pop %v1995
    %v1997 = vmul.f32 %v1996, 0.6931472
    %v1998 = vmul.f32 -0.5, %v1866
    %v1999 = vadd.f32 %v1998, 1.0
    %v2000 = vmul.f32 %v1999, %v1866
    %v2001 = vand.u32 2147483647, %v1866
    %vm2002 = vcmp.lt.f32.partialorder %v2001, 0.0004427343
    %v2003 = vsel %vm2002, %v2000, %v1997
    %v2004 = vadd.f32 %v1868, 1.0
    %v2005 = vlog2.pop %v2004
    %v2006 = vmul.f32 %v2005, 0.6931472
    %v2007 = vmul.f32 -0.5, %v1868
    %v2008 = vadd.f32 %v2007, 1.0
    %v2009 = vmul.f32 %v2008, %v1868
    %v2010 = vand.u32 2147483647, %v1868
    %vm2011 = vcmp.lt.f32.partialorder %v2010, 0.0004427343
    %v2012 = vsel %vm2011, %v2009, %v2006
    %v2013 = vmax.f32 %v1789, 0.0
    %v2014 = vmax.f32 %v1790, 0.0
    %v2015 = vmax.f32 %v1791, 0.0
    %v2016 = vmax.f32 %v1792, 0.0
    %v2017 = vmax.f32 %v1793, 0.0
    %v2018 = vmax.f32 %v1794, 0.0
    %v2019 = vmax.f32 %v1795, 0.0
    %v2020 = vmax.f32 %v1796, 0.0
    %v2021 = vmax.f32 %v1797, 0.0
    %v2022 = vmax.f32 %v1798, 0.0
    %v2023 = vmax.f32 %v1799, 0.0
    %v2024 = vmax.f32 %v1800, 0.0
    %v2025 = vmax.f32 %v1801, 0.0
    %v2026 = vmax.f32 %v1802, 0.0
    %v2027 = vmax.f32 %v1803, 0.0
    %v2028 = vmax.f32 %v1804, 0.0
    %v2029 = vadd.f32 %v2013, %v1877
    %v2030 = vadd.f32 %v2014, %v1886
    %v2031 = vadd.f32 %v2015, %v1895
    %v2032 = vadd.f32 %v2016, %v1904
    %v2033 = vadd.f32 %v2017, %v1913
    %v2034 = vadd.f32 %v2018, %v1922
    %v2035 = vadd.f32 %v2019, %v1931
    %v2036 = vadd.f32 %v2020, %v1940
    %v2037 = vadd.f32 %v2021, %v1949
    %v2038 = vadd.f32 %v2022, %v1958
    %v2039 = vadd.f32 %v2023, %v1967
    %v2040 = vadd.f32 %v2024, %v1976
    %v2041 = vadd.f32 %v2025, %v1985
    %v2042 = vadd.f32 %v2026, %v1994
    %v2043 = vadd.f32 %v2027, %v2003
    %v2044 = vadd.f32 %v2028, %v2012
    %v2045 = vsub.f32 %v2029, 0.6931472
    %v2046 = vsub.f32 %v2030, 0.6931472
    %v2047 = vsub.f32 %v2031, 0.6931472
    %v2048 = vsub.f32 %v2032, 0.6931472
    %v2049 = vsub.f32 %v2033, 0.6931472
    %v2050 = vsub.f32 %v2034, 0.6931472
    %v2051 = vsub.f32 %v2035, 0.6931472
    %v2052 = vsub.f32 %v2036, 0.6931472
    %v2053 = vsub.f32 %v2037, 0.6931472
    %v2054 = vsub.f32 %v2038, 0.6931472
    %v2055 = vsub.f32 %v2039, 0.6931472
    %v2056 = vsub.f32 %v2040, 0.6931472
    %v2057 = vsub.f32 %v2041, 0.6931472
    %v2058 = vsub.f32 %v2042, 0.6931472
    %v2059 = vsub.f32 %v2043, 0.6931472
    %v2060 = vsub.f32 %v2044, 0.6931472
    %v2061 = vpack.c.bf16 %v2049, %v2045
    %v2062 = vpack.c.bf16 %v2050, %v2046
    %v2063 = vpack.c.bf16 %v2051, %v2047
    %v2064 = vpack.c.bf16 %v2052, %v2048
    %v2065 = vpack.c.bf16 %v2057, %v2053
    %v2066 = vpack.c.bf16 %v2058, %v2054
    %v2067 = vpack.c.bf16 %v2059, %v2055
    %v2068 = vpack.c.bf16 %v2060, %v2056
    %v2069 = vld [vmem:[%s5] sm:$0xf]
    %v2070 = vld [vmem:[%s5 + $0x4] sm:$0xf]
    %v2071 = vld [vmem:[%s6] sm:$0xff]
    %v2072 = vld [vmem:[%s6 + $0x8] sm:$0xff]
    %2074 = vset.pattern.permute.xlu0 0
    %2075 = vperm.xlu0 %2074, %v2071
    %v2076 = vpop.permute.xlu0 %2075
    %2079 = vset.pattern.permute.xlu0 0
    %2080 = vperm.xlu0 %2079, %v2072
    %v2081 = vpop.permute.xlu0 %2080
    %v2085 = vunpack.c.l.b16 %v2069
    %v2086 = vunpack.c.l.b16 %v2070
    %v2087 = vpack.c.b16 %v2086, %v2085
    %v2089 = vsel %vm534, %v2087, 0
    %2091 = vmatpush.bf16.msra.mxu0 0
    %2092 = vmatpush.bf16.msra.mxu0 0
    %2093 = vmatpush.bf16.msra.mxu0 0
    %2094 = vmatpush.bf16.msra.mxu0 0
    %2095 = vmatpush.bf16.msra.mxu0 0
    %2096 = vmatpush.bf16.msra.mxu0 0
    %2097 = vmatpush.bf16.msra.mxu0 %v2065
    %2098 = vmatpush.bf16.msra.mxu0 %v2061
    %2099 = vmatmul.bf16.gmra.mxu0 %v2089
    %v2100 = vpop.f32.mrf.mxu0
    %v2101 = vadd.f32 %v2076, %v2100
    %v2102 = vpop.f32.mrf.mxu0
    %v2103 = vadd.f32 %v2081, %v2102
    %2104 = vdwg.mxu0
    %2105 = vmatpush.bf16.msra.mxu0 0
    %2106 = vmatpush.bf16.msra.mxu0 0
    %2107 = vmatpush.bf16.msra.mxu0 0
    %2108 = vmatpush.bf16.msra.mxu0 0
    %2109 = vmatpush.bf16.msra.mxu0 0
    %2110 = vmatpush.bf16.msra.mxu0 0
    %2111 = vmatpush.bf16.msra.mxu0 %v2066
    %2112 = vmatpush.bf16.msra.mxu0 %v2062
    %2113 = vmatmul.bf16.gmra.mxu0 %v2089
    %v2114 = vpop.f32.mrf.mxu0
    %v2115 = vadd.f32 %v2076, %v2114
    %v2116 = vpop.f32.mrf.mxu0
    %v2117 = vadd.f32 %v2081, %v2116
    %2118 = vdwg.mxu0
    %2119 = vmatpush.bf16.msra.mxu0 0
    %2120 = vmatpush.bf16.msra.mxu0 0
    %2121 = vmatpush.bf16.msra.mxu0 0
    %2122 = vmatpush.bf16.msra.mxu0 0
    %2123 = vmatpush.bf16.msra.mxu0 0
    %2124 = vmatpush.bf16.msra.mxu0 0
    %2125 = vmatpush.bf16.msra.mxu0 %v2067
    %2126 = vmatpush.bf16.msra.mxu0 %v2063
    %2127 = vmatmul.bf16.gmra.mxu0 %v2089
    %v2128 = vpop.f32.mrf.mxu0
    %v2129 = vadd.f32 %v2076, %v2128
    %v2130 = vpop.f32.mrf.mxu0
    %v2131 = vadd.f32 %v2081, %v2130
    %2132 = vdwg.mxu0
    %2133 = vmatpush.bf16.msra.mxu0 0
    %2134 = vmatpush.bf16.msra.mxu0 0
    %2135 = vmatpush.bf16.msra.mxu0 0
    %2136 = vmatpush.bf16.msra.mxu0 0
    %2137 = vmatpush.bf16.msra.mxu0 0
    %2138 = vmatpush.bf16.msra.mxu0 0
    %2139 = vmatpush.bf16.msra.mxu0 %v2068
    %2140 = vmatpush.bf16.msra.mxu0 %v2064
    %2141 = vmatmul.bf16.gmra.mxu0 %v2089
    %v2142 = vpop.f32.mrf.mxu0
    %v2143 = vadd.f32 %v2076, %v2142
    %v2144 = vpop.f32.mrf.mxu0
    %v2145 = vadd.f32 %v2081, %v2144
    %2146 = vdwg.mxu0
    %v2147 = vand.u32 2147483647, %v2101
    %v2148 = vand.u32 2147483647, %v2115
    %v2149 = vand.u32 2147483647, %v2129
    %v2150 = vand.u32 2147483647, %v2143
    %v2151 = vand.u32 2147483647, %v2103
    %v2152 = vand.u32 2147483647, %v2117
    %v2153 = vand.u32 2147483647, %v2131
    %v2154 = vand.u32 2147483647, %v2145
    %v2155 = vsub.f32 0.0, %v2147
    %v2156 = vsub.f32 0.0, %v2148
    %v2157 = vsub.f32 0.0, %v2149
    %v2158 = vsub.f32 0.0, %v2150
    %v2159 = vsub.f32 0.0, %v2151
    %v2160 = vsub.f32 0.0, %v2152
    %v2161 = vsub.f32 0.0, %v2153
    %v2162 = vsub.f32 0.0, %v2154
    %v2163 = vmul.f32 %v2155, 1.442695
    %v2164 = vpow.pop %v2163
    %v2165 = vmul.f32 %v2156, 1.442695
    %v2166 = vpow.pop %v2165
    %v2167 = vmul.f32 %v2157, 1.442695
    %v2168 = vpow.pop %v2167
    %v2169 = vmul.f32 %v2158, 1.442695
    %v2170 = vpow.pop %v2169
    %v2171 = vmul.f32 %v2159, 1.442695
    %v2172 = vpow.pop %v2171
    %v2173 = vmul.f32 %v2160, 1.442695
    %v2174 = vpow.pop %v2173
    %v2175 = vmul.f32 %v2161, 1.442695
    %v2176 = vpow.pop %v2175
    %v2177 = vmul.f32 %v2162, 1.442695
    %v2178 = vpow.pop %v2177
    %v2179 = vadd.f32 %v2164, 1.0
    %v2180 = vlog2.pop %v2179
    %v2181 = vmul.f32 %v2180, 0.6931472
    %v2182 = vmul.f32 -0.5, %v2164
    %v2183 = vadd.f32 %v2182, 1.0
    %v2184 = vmul.f32 %v2183, %v2164
    %v2185 = vand.u32 2147483647, %v2164
    %vm2186 = vcmp.lt.f32.partialorder %v2185, 0.0004427343
    %v2187 = vsel %vm2186, %v2184, %v2181
    %v2188 = vadd.f32 %v2166, 1.0
    %v2189 = vlog2.pop %v2188
    %v2190 = vmul.f32 %v2189, 0.6931472
    %v2191 = vmul.f32 -0.5, %v2166
    %v2192 = vadd.f32 %v2191, 1.0
    %v2193 = vmul.f32 %v2192, %v2166
    %v2194 = vand.u32 2147483647, %v2166
    %vm2195 = vcmp.lt.f32.partialorder %v2194, 0.0004427343
    %v2196 = vsel %vm2195, %v2193, %v2190
    %v2197 = vadd.f32 %v2168, 1.0
    %v2198 = vlog2.pop %v2197
    %v2199 = vmul.f32 %v2198, 0.6931472
    %v2200 = vmul.f32 -0.5, %v2168
    %v2201 = vadd.f32 %v2200, 1.0
    %v2202 = vmul.f32 %v2201, %v2168
    %v2203 = vand.u32 2147483647, %v2168
    %vm2204 = vcmp.lt.f32.partialorder %v2203, 0.0004427343
    %v2205 = vsel %vm2204, %v2202, %v2199
    %v2206 = vadd.f32 %v2170, 1.0
    %v2207 = vlog2.pop %v2206
    %v2208 = vmul.f32 %v2207, 0.6931472
    %v2209 = vmul.f32 -0.5, %v2170
    %v2210 = vadd.f32 %v2209, 1.0
    %v2211 = vmul.f32 %v2210, %v2170
    %v2212 = vand.u32 2147483647, %v2170
    %vm2213 = vcmp.lt.f32.partialorder %v2212, 0.0004427343
    %v2214 = vsel %vm2213, %v2211, %v2208
    %v2215 = vadd.f32 %v2172, 1.0
    %v2216 = vlog2.pop %v2215
    %v2217 = vmul.f32 %v2216, 0.6931472
    %v2218 = vmul.f32 -0.5, %v2172
    %v2219 = vadd.f32 %v2218, 1.0
    %v2220 = vmul.f32 %v2219, %v2172
    %v2221 = vand.u32 2147483647, %v2172
    %vm2222 = vcmp.lt.f32.partialorder %v2221, 0.0004427343
    %v2223 = vsel %vm2222, %v2220, %v2217
    %v2224 = vadd.f32 %v2174, 1.0
    %v2225 = vlog2.pop %v2224
    %v2226 = vmul.f32 %v2225, 0.6931472
    %v2227 = vmul.f32 -0.5, %v2174
    %v2228 = vadd.f32 %v2227, 1.0
    %v2229 = vmul.f32 %v2228, %v2174
    %v2230 = vand.u32 2147483647, %v2174
    %vm2231 = vcmp.lt.f32.partialorder %v2230, 0.0004427343
    %v2232 = vsel %vm2231, %v2229, %v2226
    %v2233 = vadd.f32 %v2176, 1.0
    %v2234 = vlog2.pop %v2233
    %v2235 = vmul.f32 %v2234, 0.6931472
    %v2236 = vmul.f32 -0.5, %v2176
    %v2237 = vadd.f32 %v2236, 1.0
    %v2238 = vmul.f32 %v2237, %v2176
    %v2239 = vand.u32 2147483647, %v2176
    %vm2240 = vcmp.lt.f32.partialorder %v2239, 0.0004427343
    %v2241 = vsel %vm2240, %v2238, %v2235
    %v2242 = vadd.f32 %v2178, 1.0
    %v2243 = vlog2.pop %v2242
    %v2244 = vmul.f32 %v2243, 0.6931472
    %v2245 = vmul.f32 -0.5, %v2178
    %v2246 = vadd.f32 %v2245, 1.0
    %v2247 = vmul.f32 %v2246, %v2178
    %v2248 = vand.u32 2147483647, %v2178
    %vm2249 = vcmp.lt.f32.partialorder %v2248, 0.0004427343
    %v2250 = vsel %vm2249, %v2247, %v2244
    %v2251 = vmax.f32 %v2101, 0.0
    %v2252 = vmax.f32 %v2115, 0.0
    %v2253 = vmax.f32 %v2129, 0.0
    %v2254 = vmax.f32 %v2143, 0.0
    %v2255 = vmax.f32 %v2103, 0.0
    %v2256 = vmax.f32 %v2117, 0.0
    %v2257 = vmax.f32 %v2131, 0.0
    %v2258 = vmax.f32 %v2145, 0.0
    %v2259 = vadd.f32 %v2251, %v2187
    %v2260 = vadd.f32 %v2252, %v2196
    %v2261 = vadd.f32 %v2253, %v2205
    %v2262 = vadd.f32 %v2254, %v2214
    %v2263 = vadd.f32 %v2255, %v2223
    %v2264 = vadd.f32 %v2256, %v2232
    %v2265 = vadd.f32 %v2257, %v2241
    %v2266 = vadd.f32 %v2258, %v2250
    %v2267 = vsub.f32 %v2259, 0.6931472
    %v2268 = vsub.f32 %v2260, 0.6931472
    %v2269 = vsub.f32 %v2261, 0.6931472
    %v2270 = vsub.f32 %v2262, 0.6931472
    %v2271 = vsub.f32 %v2263, 0.6931472
    %v2272 = vsub.f32 %v2264, 0.6931472
    %v2273 = vsub.f32 %v2265, 0.6931472
    %v2274 = vsub.f32 %v2266, 0.6931472
    %v2275 = vpack.c.bf16 %v2271, %v2267
    %v2276 = vpack.c.bf16 %v2272, %v2268
    %v2277 = vpack.c.bf16 %v2273, %v2269
    %v2278 = vpack.c.bf16 %v2274, %v2270
    %v2279 = vld [vmem:[%s7] sm:$0xf]
    %v2280 = vld [vmem:[%s8] sm:$0xff]
    %2282 = vset.pattern.permute.xlu0 0
    %2283 = vperm.xlu0 %2282, %v2280
    %v2284 = vpop.permute.xlu0 %2283
    %vm2286 = vcmask 130048
    %v2288 = vsel %vm2286, %v2279, 0
    %2290 = vmatpush.bf16.msra.mxu0 0
    %2291 = vmatpush.bf16.msra.mxu0 0
    %2292 = vmatpush.bf16.msra.mxu0 0
    %2293 = vmatpush.bf16.msra.mxu0 0
    %2294 = vmatpush.bf16.msra.mxu0 0
    %2295 = vmatpush.bf16.msra.mxu0 0
    %2296 = vmatpush.bf16.msra.mxu0 0
    %2297 = vmatpush.bf16.msra.mxu0 %v2275
    %2298 = vmatmul.bf16.gmra.mxu0 %v2288
    %v2299 = vpop.f32.mrf.mxu0
    %v2300 = vadd.f32 %v2284, %v2299
    %v2301 = vpop.f32.mrf.mxu0
    %2302 = vdwg.mxu0
    %2303 = vmatpush.bf16.msra.mxu0 0
    %2304 = vmatpush.bf16.msra.mxu0 0
    %2305 = vmatpush.bf16.msra.mxu0 0
    %2306 = vmatpush.bf16.msra.mxu0 0
    %2307 = vmatpush.bf16.msra.mxu0 0
    %2308 = vmatpush.bf16.msra.mxu0 0
    %2309 = vmatpush.bf16.msra.mxu0 0
    %2310 = vmatpush.bf16.msra.mxu0 %v2276
    %2311 = vmatmul.bf16.gmra.mxu0 %v2288
    %v2312 = vpop.f32.mrf.mxu0
    %v2313 = vadd.f32 %v2284, %v2312
    %v2314 = vpop.f32.mrf.mxu0
    %2315 = vdwg.mxu0
    %2316 = vmatpush.bf16.msra.mxu0 0
    %2317 = vmatpush.bf16.msra.mxu0 0
    %2318 = vmatpush.bf16.msra.mxu0 0
    %2319 = vmatpush.bf16.msra.mxu0 0
    %2320 = vmatpush.bf16.msra.mxu0 0
    %2321 = vmatpush.bf16.msra.mxu0 0
    %2322 = vmatpush.bf16.msra.mxu0 0
    %2323 = vmatpush.bf16.msra.mxu0 %v2277
    %2324 = vmatmul.bf16.gmra.mxu0 %v2288
    %v2325 = vpop.f32.mrf.mxu0
    %v2326 = vadd.f32 %v2284, %v2325
    %v2327 = vpop.f32.mrf.mxu0
    %2328 = vdwg.mxu0
    %2329 = vmatpush.bf16.msra.mxu0 0
    %2330 = vmatpush.bf16.msra.mxu0 0
    %2331 = vmatpush.bf16.msra.mxu0 0
    %2332 = vmatpush.bf16.msra.mxu0 0
    %2333 = vmatpush.bf16.msra.mxu0 0
    %2334 = vmatpush.bf16.msra.mxu0 0
    %2335 = vmatpush.bf16.msra.mxu0 0
    %2336 = vmatpush.bf16.msra.mxu0 %v2278
    %2337 = vmatmul.bf16.gmra.mxu0 %v2288
    %v2338 = vpop.f32.mrf.mxu0
    %v2339 = vadd.f32 %v2284, %v2338
    %v2340 = vpop.f32.mrf.mxu0
    %2341 = vdwg.mxu0
    %v2342 = vand.u32 2147483647, %v2300
    %v2343 = vand.u32 2147483647, %v2313
    %v2344 = vand.u32 2147483647, %v2326
    %v2345 = vand.u32 2147483647, %v2339
    %v2346 = vsub.f32 0.0, %v2342
    %v2347 = vsub.f32 0.0, %v2343
    %v2348 = vsub.f32 0.0, %v2344
    %v2349 = vsub.f32 0.0, %v2345
    %v2350 = vmul.f32 %v2346, 1.442695
    %v2351 = vpow.pop %v2350
    %v2352 = vmul.f32 %v2347, 1.442695
    %v2353 = vpow.pop %v2352
    %v2354 = vmul.f32 %v2348, 1.442695
    %v2355 = vpow.pop %v2354
    %v2356 = vmul.f32 %v2349, 1.442695
    %v2357 = vpow.pop %v2356
    %v2358 = vadd.f32 %v2351, 1.0
    %v2359 = vlog2.pop %v2358
    %v2360 = vmul.f32 %v2359, 0.6931472
    %v2361 = vmul.f32 -0.5, %v2351
    %v2362 = vadd.f32 %v2361, 1.0
    %v2363 = vmul.f32 %v2362, %v2351
    %v2364 = vand.u32 2147483647, %v2351
    %vm2365 = vcmp.lt.f32.partialorder %v2364, 0.0004427343
    %v2366 = vsel %vm2365, %v2363, %v2360
    %v2367 = vadd.f32 %v2353, 1.0
    %v2368 = vlog2.pop %v2367
    %v2369 = vmul.f32 %v2368, 0.6931472
    %v2370 = vmul.f32 -0.5, %v2353
    %v2371 = vadd.f32 %v2370, 1.0
    %v2372 = vmul.f32 %v2371, %v2353
    %v2373 = vand.u32 2147483647, %v2353
    %vm2374 = vcmp.lt.f32.partialorder %v2373, 0.0004427343
    %v2375 = vsel %vm2374, %v2372, %v2369
    %v2376 = vadd.f32 %v2355, 1.0
    %v2377 = vlog2.pop %v2376
    %v2378 = vmul.f32 %v2377, 0.6931472
    %v2379 = vmul.f32 -0.5, %v2355
    %v2380 = vadd.f32 %v2379, 1.0
    %v2381 = vmul.f32 %v2380, %v2355
    %v2382 = vand.u32 2147483647, %v2355
    %vm2383 = vcmp.lt.f32.partialorder %v2382, 0.0004427343
    %v2384 = vsel %vm2383, %v2381, %v2378
    %v2385 = vadd.f32 %v2357, 1.0
    %v2386 = vlog2.pop %v2385
    %v2387 = vmul.f32 %v2386, 0.6931472
    %v2388 = vmul.f32 -0.5, %v2357
    %v2389 = vadd.f32 %v2388, 1.0
    %v2390 = vmul.f32 %v2389, %v2357
    %v2391 = vand.u32 2147483647, %v2357
    %vm2392 = vcmp.lt.f32.partialorder %v2391, 0.0004427343
    %v2393 = vsel %vm2392, %v2390, %v2387
    %v2394 = vmax.f32 %v2300, 0.0
    %v2395 = vmax.f32 %v2313, 0.0
    %v2396 = vmax.f32 %v2326, 0.0
    %v2397 = vmax.f32 %v2339, 0.0
    %v2398 = vadd.f32 %v2394, %v2366
    %v2399 = vadd.f32 %v2395, %v2375
    %v2400 = vadd.f32 %v2396, %v2384
    %v2401 = vadd.f32 %v2397, %v2393
    %v2402 = vsub.f32 %v2398, 0.6931472
    %v2403 = vsub.f32 %v2399, 0.6931472
    %v2404 = vsub.f32 %v2400, 0.6931472
    %v2405 = vsub.f32 %v2401, 0.6931472
    %2406 = vst [vmem:[#allocation4] sm:$0xff] %v2402
    %2407 = vst [vmem:[#allocation4 + $0x8] sm:$0xff] %v2403
    %2408 = vst [vmem:[#allocation4 + $0x10] sm:$0xff] %v2404
    %2409 = vst [vmem:[#allocation4 + $0x18] sm:$0xff] %v2405
    %v2410 = vld [vmem:[%s9] sm:$0x3]
    %v2411 = vpack.c.bf16 %v2402, %v2402
    %v2412 = vpack.c.bf16 %v2403, %v2403
    %v2413 = vpack.c.bf16 %v2404, %v2404
    %v2414 = vpack.c.bf16 %v2405, %v2405
    %vm2415 = vcmask 64512
    %v2417 = vsel %vm2415, %v2410, 0
    %vm2419 = vcmask 1043456
    %v2421 = vsel %vm2419, %v2411, 0
    %v2424 = vsel %vm2419, %v2412, 0
    %v2427 = vsel %vm2419, %v2413, 0
    %v2430 = vsel %vm2419, %v2414, 0
    %2432 = vmatpush.bf16.msra.mxu0 0
    %2433 = vmatpush.bf16.msra.mxu0 0
    %2434 = vmatpush.bf16.msra.mxu0 0
    %2435 = vmatpush.bf16.msra.mxu0 0
    %2436 = vmatpush.bf16.msra.mxu0 0
    %2437 = vmatpush.bf16.msra.mxu0 0
    %2438 = vmatpush.bf16.msra.mxu0 0
    %2439 = vmatpush.bf16.msra.mxu0 %v2421
    %2440 = vmatmul.bf16.gmra.mxu0 %v2417
    %v2441 = vpop.f32.mrf.mxu0
    %v2442 = vadd.f32 0.0, %v2441
    %v2443 = vpop.f32.mrf.mxu0
    %2444 = vdwg.mxu0
    %2445 = vmatpush.bf16.msra.mxu0 0
    %2446 = vmatpush.bf16.msra.mxu0 0
    %2447 = vmatpush.bf16.msra.mxu0 0
    %2448 = vmatpush.bf16.msra.mxu0 0
    %2449 = vmatpush.bf16.msra.mxu0 0
    %2450 = vmatpush.bf16.msra.mxu0 0
    %2451 = vmatpush.bf16.msra.mxu0 0
    %2452 = vmatpush.bf16.msra.mxu0 %v2424
    %2453 = vmatmul.bf16.gmra.mxu0 %v2417
    %v2454 = vpop.f32.mrf.mxu0
    %v2455 = vadd.f32 0.0, %v2454
    %v2456 = vpop.f32.mrf.mxu0
    %2457 = vdwg.mxu0
    %2458 = vmatpush.bf16.msra.mxu0 0
    %2459 = vmatpush.bf16.msra.mxu0 0
    %2460 = vmatpush.bf16.msra.mxu0 0
    %2461 = vmatpush.bf16.msra.mxu0 0
    %2462 = vmatpush.bf16.msra.mxu0 0
    %2463 = vmatpush.bf16.msra.mxu0 0
    %2464 = vmatpush.bf16.msra.mxu0 0
    %2465 = vmatpush.bf16.msra.mxu0 %v2427
    %2466 = vmatmul.bf16.gmra.mxu0 %v2417
    %v2467 = vpop.f32.mrf.mxu0
    %v2468 = vadd.f32 0.0, %v2467
    %v2469 = vpop.f32.mrf.mxu0
    %2470 = vdwg.mxu0
    %2471 = vmatpush.bf16.msra.mxu0 0
    %2472 = vmatpush.bf16.msra.mxu0 0
    %2473 = vmatpush.bf16.msra.mxu0 0
    %2474 = vmatpush.bf16.msra.mxu0 0
    %2475 = vmatpush.bf16.msra.mxu0 0
    %2476 = vmatpush.bf16.msra.mxu0 0
    %2477 = vmatpush.bf16.msra.mxu0 0
    %2478 = vmatpush.bf16.msra.mxu0 %v2430
    %2479 = vmatmul.bf16.gmra.mxu0 %v2417
    %v2480 = vpop.f32.mrf.mxu0
    %v2481 = vadd.f32 0.0, %v2480
    %v2482 = vpop.f32.mrf.mxu0
    %2483 = vdwg.mxu0
    %v2488 = vrot.slane %v2455, 4
    %v2489 = vrot.slane %v2481, 4
    %v2490 = vsel %vm2419, %v2442, %v2488
    %v2491 = vsel %vm2419, %v2468, %v2489
    %2494 = vst [vmem:[#allocation2] sm:$0x77] %v2490
    %2495 = vst [vmem:[#allocation2 + $0x8] sm:$0x77] %v2491
    // Predicated region
    $region42: #{tpu_custom_call.1} parent=1 // pred_check
      _
    $region43: #{tpu_custom_call.1} parent=1 // pred_check_branch
      %2497 = sbr.rel (0) target = $region45
    $region44: #{tpu_custom_call.1} parent=1 // pred_region
      %2499 = vsyncadd [#allocation3], 0
      %s2501 = sshll.u32 [#allocation2], 4
      %s2502 = int_to_ptr.vmem [resolvable:$true] %s2501
      %s2503 = sshll.u32 %s10, 4
      %s2504 = int_to_ptr.hbm [resolvable:$true] %s2503
      %2506 = dma.vmem_to_hbm [thread:$0]  %s2502, 256, %s2504, [#allocation3]
    $region45: #{tpu_custom_call.1} parent=1 // pred_fallthru
      _
    // Predicated region
    $region46: #{tpu_custom_call.1} parent=1 // pred_check
      _
    $region47: #{tpu_custom_call.1} parent=1 // pred_check_branch
      %2508 = sbr.rel (0) target = $region49
    $region48: #{tpu_custom_call.1} parent=1 // pred_region
      %2510 = vsyncadd [#allocation5], 0
      %s2512 = sshll.u32 [#allocation4], 4
      %s2513 = int_to_ptr.vmem [resolvable:$true] %s2512
      %s2514 = sshll.u32 %s11, 4
      %s2515 = int_to_ptr.hbm [resolvable:$true] %s2514
      %2517 = dma.vmem_to_hbm [thread:$0]  %s2513, 512, %s2515, [#allocation5]
    $region49: #{tpu_custom_call.1} parent=1 // pred_fallthru
      _
    // Predicated region
    $region50: #{tpu_custom_call.1} parent=1 // pred_check
      _
    $region51: #{tpu_custom_call.1} parent=1 // pred_check_branch
      %2519 = sbr.rel (0) target = $region53
    $region52: #{tpu_custom_call.1} parent=1 // pred_region
      %2521 = dma.done [#allocation3], 256
    $region53: #{tpu_custom_call.1} parent=1 // pred_fallthru
      _
    // Predicated region
    $region54: #{tpu_custom_call.1} parent=1 // pred_check
      _
    $region55: #{tpu_custom_call.1} parent=1 // pred_check_branch
      %2523 = sbr.rel (0) target = $region57
    $region56: #{tpu_custom_call.1} parent=1 // pred_region
      %2525 = dma.done [#allocation5], 512
    $region57: #{tpu_custom_call.1} parent=1 // pred_fallthru
      _
    %2526 = vsyncpa [#allocation3], 1
    %2527 = vsyncpa [#allocation5], 1

</llo_original>
